<compile_context>
chip_gen: v7x
topology: tpu7x:2x2x1
jax: 0.10.0
libtpu: 0.0.40
codegen_flags: <defaults>
</compile_context>

<pallas_src>
import functools
import math

import jax
import jax.numpy as jnp
from jax.experimental import pallas as pl
from jax.experimental.pallas import tpu as pltpu


def _round_up(n, m):
    return ((n + m - 1) // m) * m


def _tpu_kind():
    try:
        return jax.devices()[0].device_kind.lower()
    except Exception:
        return ""


def _layernorm(x, w, b, eps):
    # single-pass mean/variance: one sum(x) + one sum(x*x) lane reduction
    inv_n = 1.0 / x.shape[-1]
    m = jnp.sum(x, axis=-1, keepdims=True) * inv_n
    m2 = jnp.sum(x * x, axis=-1, keepdims=True) * inv_n
    var = m2 - m * m
    return (x - m) * jax.lax.rsqrt(var + eps) * w + b


# --------------------------------------------------------------------------
# Pass 1: LN1 + fused QKV projection (q pre-scaled on host)
# --------------------------------------------------------------------------
def qkv_proj_kernel(x_ref, ln1w_ref, ln1b_ref, wqkv_ref, bqkv_ref,
                    q_ref, k_ref, v_ref, *, eps):
    C = x_ref.shape[-1]
    x = x_ref[0]                                              # (t, C) f32
    h = _layernorm(x, ln1w_ref[...], ln1b_ref[...], eps)      # f32
    qkv = jnp.dot(h.astype(jnp.bfloat16), wqkv_ref[...],
                  preferred_element_type=jnp.float32) + bqkv_ref[...]
    qkv = qkv.astype(jnp.bfloat16)                            # (t, 3C)
    q_ref[0] = qkv[:, :C]
    k_ref[0] = qkv[:, C:2 * C]
    v_ref[0] = qkv[:, 2 * C:]


# --------------------------------------------------------------------------
# Pass 2: attention + out_proj + residual + LN2 + MLP + residual
# --------------------------------------------------------------------------
def encoder_body_kernel(x_ref, q_ref, k_ref, v_ref,
                        wo_ref, bo_ref, ln2w_ref, ln2b_ref,
                        w1_ref, b1_ref, w2_ref, b2_ref,
                        out_ref, oh_s,
                        *, num_heads, head_dim, eps, t_actual, use_bf16_eup):
    Tp = k_ref.shape[1]
    tq = x_ref.shape[1]

    x_tile = x_ref[0]                                         # (tq, C) f32 residual
    q_tile = q_ref[0]                                         # (tq, C) bf16 (scaled)
    k_full = k_ref[0]                                         # (Tp, C) bf16
    v_full = v_ref[0]                                         # (Tp, C) bf16

    if t_actual < Tp:  # static: mask padded key columns
        col = jax.lax.broadcasted_iota(jnp.int32, (tq, Tp), 1)
        key_valid = col < t_actual
    else:
        key_valid = None

    # per-head attention; head outputs land in one (tq, C) bf16 scratch slab
    for hi in range(num_heads):
        lo = hi * head_dim
        qh = q_tile[:, lo:lo + head_dim]                      # (tq, Dh) bf16
        kh = k_full[:, lo:lo + head_dim]                      # (Tp, Dh) bf16
        vh = v_full[:, lo:lo + head_dim]                      # (Tp, Dh) bf16
        s = jax.lax.dot_general(qh, kh, (((1,), (1,)), ((), ())),
                                preferred_element_type=jnp.float32)   # (tq, Tp)
        if key_valid is not None:
            s = jnp.where(key_valid, s, jnp.float32(-1e30))
        s = s - jnp.max(s, axis=-1, keepdims=True)
        p = jnp.exp(s)
        p = p * pl.reciprocal(jnp.sum(p, axis=-1, keepdims=True), approx=True)
        oh = jnp.dot(p.astype(jnp.bfloat16), vh,
                     preferred_element_type=jnp.float32)      # (tq, Dh)
        oh_s[:, lo:lo + head_dim] = oh.astype(jnp.bfloat16)

    # one full-width output projection: K = C on the MXU
    attn = jnp.dot(oh_s[...], wo_ref[...],
                   preferred_element_type=jnp.float32) + bo_ref[...]
    h1 = x_tile + attn                                        # first residual

    h2 = _layernorm(h1, ln2w_ref[...], ln2b_ref[...], eps)    # LN2 (f32)

    # MLP: bf16 matmuls, f32 accumulate, quick_gelu = x * sigmoid(1.702 x)
    f = jnp.dot(h2.astype(jnp.bfloat16), w1_ref[...],
                preferred_element_type=jnp.float32) + b1_ref[...]
    if use_bf16_eup:
        g = jax.nn.sigmoid((1.702 * f).astype(jnp.bfloat16)).astype(jnp.float32)
    else:
        g = jax.nn.sigmoid(1.702 * f)
    f = f * g
    f = jnp.dot(f.astype(jnp.bfloat16), w2_ref[...],
                preferred_element_type=jnp.float32) + b2_ref[...]

    out_ref[0] = h1 + f                                       # second residual


# --------------------------------------------------------------------------
# Host wrapper
# --------------------------------------------------------------------------
def clip_encoder_layer(x, params, *, num_heads, eps=1e-5, q_tile=None):
    """x: (B, T, C) float32. params: dict of f32 weights (see init_params)."""
    B, T, C = x.shape
    assert C % num_heads == 0
    head_dim = C // num_heads
    scale = head_dim ** (-0.5)
    I = params["w1"].shape[1]

    kind = _tpu_kind()
    is_v5_or_older = any(t in kind for t in ("v2", "v3", "v4", "v5"))
    use_bf16_eup = any(t in kind for t in ("v6", "v7"))

    # --- sequence padding / query tiling (256 fills the 256-wide MXU on v6e/v7x) ---
    if q_tile is None:
        q_tile = min(128 if is_v5_or_older else 256, _round_up(T, 8))
    assert q_tile % 8 == 0
    t_q = q_tile
    Tp = _round_up(T, t_q)
    nq = Tp // t_q
    x_p = x if Tp == T else jnp.pad(x, ((0, 0), (0, Tp - T), (0, 0)))

    # --- host-side weight prep: fold scale into q, fuse QKV, bf16 MXU operands ---
    wqkv = jnp.concatenate(
        [params["wq"] * scale, params["wk"], params["wv"]], axis=1).astype(jnp.bfloat16)
    bqkv = jnp.concatenate(
        [params["bq"] * scale, params["bk"], params["bv"]], axis=1).astype(jnp.float32)
    wo = params["wo"].astype(jnp.bfloat16)
    w1 = params["w1"].astype(jnp.bfloat16)
    w2 = params["w2"].astype(jnp.bfloat16)

    # --- VMEM budget, clamped to the actual chip capacity ---
    def nbytes(shape, dtype):
        return math.prod(shape) * jnp.dtype(dtype).itemsize

    try:
        vmem_capacity = int(pltpu.get_tpu_info().vmem_capacity_bytes)
    except Exception:
        vmem_capacity = 128 << 20
    vmem_ceiling = max(vmem_capacity - (12 << 20), 16 << 20)

    def proj_vmem(wbufs):
        wb = wbufs * (nbytes((C, 3 * C), jnp.bfloat16) + nbytes((1, 3 * C), jnp.float32)
                      + 2 * nbytes((1, C), jnp.float32))
        act = (2 * nbytes((1, t_q, C), jnp.float32)
               + 6 * nbytes((1, t_q, C), jnp.bfloat16))
        temps = 2 * nbytes((t_q, 3 * C), jnp.float32) + 4 * nbytes((t_q, C), jnp.float32)
        return wb + act + temps + (2 << 20)

    def body_vmem(wbufs):
        wb = wbufs * (nbytes((C, C), jnp.bfloat16) + nbytes((C, I), jnp.bfloat16)
                      + nbytes((I, C), jnp.bfloat16) + nbytes((1, I), jnp.float32)
                      + 5 * nbytes((1, C), jnp.float32))
        act = (2 * nbytes((1, t_q, C), jnp.float32)      # x residual tiles
               + 2 * nbytes((1, t_q, C), jnp.bfloat16)   # q tiles
               + 4 * nbytes((1, Tp, C), jnp.bfloat16)    # k, v full-seq blocks
               + 2 * nbytes((1, t_q, C), jnp.float32))   # out tiles
        scratch = nbytes((t_q, C), jnp.bfloat16)
        temps = (2 * nbytes((t_q, Tp), jnp.float32)
                 + 2 * nbytes((t_q, I), jnp.float32)
                 + 6 * nbytes((t_q, C), jnp.float32))
        return wb + act + scratch + temps + (4 << 20)

    def run(single_buffer_weights):
        nbuf = 1 if single_buffer_weights else 2

        def wspec(shape):
            idx = lambda b, i: tuple(0 for _ in shape)
            if single_buffer_weights:
                return pl.BlockSpec(shape, idx, pipeline_mode=pl.Buffered(1))
            return pl.BlockSpec(shape, idx)

        # ---- pass 1: LN1 + fused QKV ----
        q_b, k_b, v_b = pl.pallas_call(
            functools.partial(qkv_proj_kernel, eps=eps),
            out_shape=(jax.ShapeDtypeStruct((B, Tp, C), jnp.bfloat16),
                       jax.ShapeDtypeStruct((B, Tp, C), jnp.bfloat16),
                       jax.ShapeDtypeStruct((B, Tp, C), jnp.bfloat16)),
            grid_spec=pltpu.PrefetchScalarGridSpec(
                num_scalar_prefetch=0,
                grid=(B, nq),
                in_specs=[
                    pl.BlockSpec((1, t_q, C), lambda b, i: (b, i, 0)),
                    wspec((1, C)), wspec((1, C)),
                    wspec((C, 3 * C)), wspec((1, 3 * C)),
                ],
                out_specs=[pl.BlockSpec((1, t_q, C), lambda b, i: (b, i, 0))] * 3,
            ),
            compiler_params=pltpu.CompilerParams(
                dimension_semantics=("parallel", "parallel"),
                vmem_limit_bytes=int(min(max(proj_vmem(nbuf), 16 << 20), vmem_ceiling)),
            ),
        )(x_p, params["ln1_w"], params["ln1_b"], wqkv, bqkv)

        # ---- pass 2: attention + out_proj + residual + LN2 + MLP + residual ----
        out = pl.pallas_call(
            functools.partial(
                encoder_body_kernel,
                num_heads=num_heads, head_dim=head_dim, eps=eps,
                t_actual=T, use_bf16_eup=use_bf16_eup),
            out_shape=jax.ShapeDtypeStruct((B, Tp, C), jnp.float32),
            grid_spec=pltpu.PrefetchScalarGridSpec(
                num_scalar_prefetch=0,
                grid=(B, nq),
                in_specs=[
                    pl.BlockSpec((1, t_q, C), lambda b, i: (b, i, 0)),   # x residual
                    pl.BlockSpec((1, t_q, C), lambda b, i: (b, i, 0)),   # q tile
                    pl.BlockSpec((1, Tp, C), lambda b, i: (b, 0, 0)),    # k full seq
                    pl.BlockSpec((1, Tp, C), lambda b, i: (b, 0, 0)),    # v full seq
                    wspec((C, C)), wspec((1, C)),                        # out_proj
                    wspec((1, C)), wspec((1, C)),                        # ln2
                    wspec((C, I)), wspec((1, I)),                        # fc1
                    wspec((I, C)), wspec((1, C)),                        # fc2
                ],
                out_specs=pl.BlockSpec((1, t_q, C), lambda b, i: (b, i, 0)),
                scratch_shapes=[pltpu.VMEM((t_q, C), jnp.bfloat16)],     # head outputs
            ),
            compiler_params=pltpu.CompilerParams(
                dimension_semantics=("parallel", "parallel"),
                vmem_limit_bytes=int(min(max(body_vmem(nbuf), 32 << 20), vmem_ceiling)),
            ),
        )(x_p, q_b, k_b, v_b,
          wo, params["bo"], params["ln2_w"], params["ln2_b"],
          w1, params["b1"], w2, params["b2"])
        return out

    try:
        out = run(True)      # single-buffer the invariant weights
    except Exception:
        out = run(False)     # fallback if pl.Buffered(1) is unsupported here

    return out[:, :T, :] if Tp != T else out


def init_params(key, C, I):
    """Deterministic synthetic parameters.

    Linear weights are stored pre-transposed as (in_features, out_features),
    i.e. W_jax = W_torch.T, so math is x @ W + b (== PyTorch x @ W_torch.T + b).
    """
    ks = jax.random.split(key, 12)
    s = 0.1
    p = {
        "ln1_w": jnp.ones((1, C), jnp.float32) + 0.01 * jax.random.normal(ks[0], (1, C)),
        "ln1_b": 0.01 * jax.random.normal(ks[1], (1, C)),
        "wq": s * jax.random.normal(ks[2], (C, C)),
        "bq": s * jax.random.normal(ks[3], (1, C)),
        "wk": s * jax.random.normal(ks[4], (C, C)),
        "bk": jnp.zeros((1, C), jnp.float32),
        "wv": s * jax.random.normal(ks[5], (C, C)),
        "bv": jnp.zeros((1, C), jnp.float32),
        "wo": s * jax.random.normal(ks[6], (C, C)),
        "bo": jnp.zeros((1, C), jnp.float32),
        "ln2_w": jnp.ones((1, C), jnp.float32) + 0.01 * jax.random.normal(ks[7], (1, C)),
        "ln2_b": 0.01 * jax.random.normal(ks[8], (1, C)),
        "w1": s * jax.random.normal(ks[9], (C, I)),
        "b1": s * jax.random.normal(ks[10], (1, I)),
        "w2": s * jax.random.normal(ks[11], (I, C)),
        "b2": jnp.zeros((1, C), jnp.float32),
    }
    return {k: v.astype(jnp.float32) for k, v in p.items()}


def _quick_gelu(x):
    return x * jax.nn.sigmoid(1.702 * x)


def _reference(x, p, *, num_heads, eps=1e-5):
    """Pure-JAX f32 reference mirroring the PyTorch forward (eval mode)."""
    B, T, C = x.shape
    Dh = C // num_heads
    scale = Dh ** (-0.5)

    def ln(z, w, b):
        mu = jnp.mean(z, axis=-1, keepdims=True)
        var = jnp.mean((z - mu) ** 2, axis=-1, keepdims=True)
        return (z - mu) / jnp.sqrt(var + eps) * w + b

    h = ln(x, p["ln1_w"], p["ln1_b"])
    q = (h @ p["wq"] + p["bq"]) * scale
    k = h @ p["wk"] + p["bk"]
    v = h @ p["wv"] + p["bv"]
    q = q.reshape(B, T, num_heads, Dh).transpose(0, 2, 1, 3)
    k = k.reshape(B, T, num_heads, Dh).transpose(0, 2, 1, 3)
    v = v.reshape(B, T, num_heads, Dh).transpose(0, 2, 1, 3)
    s = jnp.einsum("bhqd,bhkd->bhqk", q, k)
    a = jax.nn.softmax(s, axis=-1)
    o = jnp.einsum("bhqk,bhkd->bhqd", a, v)
    o = o.transpose(0, 2, 1, 3).reshape(B, T, C)
    o = o @ p["wo"] + p["bo"]
    h1 = x + o
    h2 = ln(h1, p["ln2_w"], p["ln2_b"])
    f = h2 @ p["w1"] + p["b1"]
    f = _quick_gelu(f)
    f = f @ p["w2"] + p["b2"]
    return h1 + f


if __name__ == "__main__":
    num_heads = 4
    C = 32
    I = 2 * C
    key = jax.random.PRNGKey(0)
    kx, kp = jax.random.split(key)
    params = init_params(kp, C, I)

    # cfg1: aligned sequence, single query tile
    # cfg2: unaligned sequence (padding + key mask) with multiple query tiles
    configs = [
        dict(B=2, T=8, q_tile=None),
        dict(B=2, T=20, q_tile=8),
    ]
    for ci, cfg in enumerate(configs):
        B, T = cfg["B"], cfg["T"]
        x = jax.random.normal(jax.random.fold_in(kx, ci), (B, T, C), dtype=jnp.float32)
        out = clip_encoder_layer(x, params, num_heads=num_heads, q_tile=cfg["q_tile"])
        out = jax.block_until_ready(out)
        ref = _reference(x, params, num_heads=num_heads)
        assert out.shape == (B, T, C)
        err = float(jnp.max(jnp.abs(out - ref)))
        assert jnp.allclose(out, ref, atol=2e-2, rtol=2e-2), (ci, err)

    print("KERNEL_OK")
</pallas_src>

<mosaic_0001>
module attributes {stable_mosaic.version = 11 : i64} {
  func.func @qkv_proj_kernel(%arg0: i32, %arg1: i32, %arg2: memref<1x8x32xf32, #tpu.memory_space<vmem>>, %arg3: memref<1x32xf32, #tpu.memory_space<vmem>>, %arg4: memref<1x32xf32, #tpu.memory_space<vmem>>, %arg5: memref<32x96xbf16, #tpu.memory_space<vmem>>, %arg6: memref<1x96xf32, #tpu.memory_space<vmem>>, %arg7: memref<1x8x32xbf16, #tpu.memory_space<vmem>>, %arg8: memref<1x8x32xbf16, #tpu.memory_space<vmem>>, %arg9: memref<1x8x32xbf16, #tpu.memory_space<vmem>>) attributes {dimension_semantics = [#tpu.dimension_semantics<parallel>, #tpu.dimension_semantics<parallel>], iteration_bounds = array<i64: 2, 1>, scalar_prefetch = 0 : i64, scratch_operands = 0 : i64, tpu.core_type = #tpu.core_type<tc>, window_params = [{transform_indices = @transform_0, window_bounds = array<i64: 1, 8, 32>}, {pipeline_mode = #tpu.pipeline_mode<synchronous>, transform_indices = @transform_1, window_bounds = array<i64: 1, 32>}, {pipeline_mode = #tpu.pipeline_mode<synchronous>, transform_indices = @transform_2, window_bounds = array<i64: 1, 32>}, {pipeline_mode = #tpu.pipeline_mode<synchronous>, transform_indices = @transform_3, window_bounds = array<i64: 32, 96>}, {pipeline_mode = #tpu.pipeline_mode<synchronous>, transform_indices = @transform_4, window_bounds = array<i64: 1, 96>}, {transform_indices = @transform_5, window_bounds = array<i64: 1, 8, 32>}, {transform_indices = @transform_6, window_bounds = array<i64: 1, 8, 32>}, {transform_indices = @transform_7, window_bounds = array<i64: 1, 8, 32>}]} {
    %c0 = arith.constant 0 : index
    %c0_0 = arith.constant 0 : index
    %c0_1 = arith.constant 0 : index
    %0 = vector.load %arg2[%c0, %c0_0, %c0_1] : memref<1x8x32xf32, #tpu.memory_space<vmem>>, vector<1x8x32xf32>
    %1 = vector.shape_cast %0 : vector<1x8x32xf32> to vector<8x32xf32>
    %c0_2 = arith.constant 0 : index
    %c0_3 = arith.constant 0 : index
    %2 = vector.load %arg3[%c0_2, %c0_3] : memref<1x32xf32, #tpu.memory_space<vmem>>, vector<1x32xf32>
    %c0_4 = arith.constant 0 : index
    %c0_5 = arith.constant 0 : index
    %3 = vector.load %arg4[%c0_4, %c0_5] : memref<1x32xf32, #tpu.memory_space<vmem>>, vector<1x32xf32>
    %cst = arith.constant dense<0.000000e+00> : vector<8xf32>
    %4 = vector.multi_reduction <add>, %1, %cst [1] : vector<8x32xf32> to vector<8xf32>
    %5 = vector.shape_cast %4 : vector<8xf32> to vector<8x1xf32>
    %cst_6 = arith.constant 3.125000e-02 : f32
    %6 = vector.broadcast %cst_6 : f32 to vector<8x1xf32>
    %7 = arith.mulf %5, %6 : vector<8x1xf32>
    %8 = arith.mulf %1, %1 : vector<8x32xf32>
    %cst_7 = arith.constant dense<0.000000e+00> : vector<8xf32>
    %9 = vector.multi_reduction <add>, %8, %cst_7 [1] : vector<8x32xf32> to vector<8xf32>
    %10 = vector.shape_cast %9 : vector<8xf32> to vector<8x1xf32>
    %cst_8 = arith.constant 3.125000e-02 : f32
    %11 = vector.broadcast %cst_8 : f32 to vector<8x1xf32>
    %12 = arith.mulf %10, %11 : vector<8x1xf32>
    %13 = arith.mulf %7, %7 : vector<8x1xf32>
    %14 = arith.subf %12, %13 : vector<8x1xf32>
    %15 = vector.broadcast %7 : vector<8x1xf32> to vector<8x32xf32>
    %16 = arith.subf %1, %15 : vector<8x32xf32>
    %cst_9 = arith.constant 9.99999974E-6 : f32
    %17 = vector.broadcast %cst_9 : f32 to vector<8x1xf32>
    %18 = arith.addf %14, %17 : vector<8x1xf32>
    %19 = math.rsqrt %18 : vector<8x1xf32>
    %20 = vector.broadcast %19 : vector<8x1xf32> to vector<8x32xf32>
    %21 = arith.mulf %16, %20 : vector<8x32xf32>
    %22 = vector.broadcast %2 : vector<1x32xf32> to vector<8x32xf32>
    %23 = arith.mulf %21, %22 : vector<8x32xf32>
    %24 = vector.broadcast %3 : vector<1x32xf32> to vector<8x32xf32>
    %25 = arith.addf %23, %24 : vector<8x32xf32>
    %26 = arith.truncf %25 : vector<8x32xf32> to vector<8x32xbf16>
    %c0_10 = arith.constant 0 : index
    %c0_11 = arith.constant 0 : index
    %27 = vector.load %arg5[%c0_10, %c0_11] : memref<32x96xbf16, #tpu.memory_space<vmem>>, vector<32x96xbf16>
    %cst_12 = arith.constant dense<0.000000e+00> : vector<8x96xf32>
    %28 = tpu.matmul %26, %27, %cst_12 {dimension_numbers = #tpu.dot_dimension_numbers<[1], [0], [0], [1], [0, 0, 1, 1], [], []>} : vector<8x32xbf16>, vector<32x96xbf16>, vector<8x96xf32> -> vector<8x96xf32>
    %c0_13 = arith.constant 0 : index
    %c0_14 = arith.constant 0 : index
    %29 = vector.load %arg6[%c0_13, %c0_14] : memref<1x96xf32, #tpu.memory_space<vmem>>, vector<1x96xf32>
    %30 = vector.broadcast %29 : vector<1x96xf32> to vector<8x96xf32>
    %31 = arith.addf %28, %30 : vector<8x96xf32>
    %32 = arith.truncf %31 : vector<8x96xf32> to vector<8x96xbf16>
    %33 = vector.extract_strided_slice %32 {offsets = [0, 0], sizes = [8, 32], strides = [1, 1]} : vector<8x96xbf16> to vector<8x32xbf16>
    %c0_15 = arith.constant 0 : index
    %c0_16 = arith.constant 0 : index
    %c0_17 = arith.constant 0 : index
    %34 = vector.load %arg7[%c0_15, %c0_16, %c0_17] : memref<1x8x32xbf16, #tpu.memory_space<vmem>>, vector<1x8x32xbf16>
    %35 = vector.shape_cast %34 : vector<1x8x32xbf16> to vector<8x32xbf16>
    %36 = vector.shape_cast %33 : vector<8x32xbf16> to vector<1x8x32xbf16>
    tpu.vector_store %arg7[%c0_15, %c0_16, %c0_17], %36 {strides = array<i32>} : memref<1x8x32xbf16, #tpu.memory_space<vmem>>, vector<1x8x32xbf16>,
    %37 = vector.extract_strided_slice %32 {offsets = [0, 32], sizes = [8, 32], strides = [1, 1]} : vector<8x96xbf16> to vector<8x32xbf16>
    %c0_18 = arith.constant 0 : index
    %c0_19 = arith.constant 0 : index
    %c0_20 = arith.constant 0 : index
    %38 = vector.load %arg8[%c0_18, %c0_19, %c0_20] : memref<1x8x32xbf16, #tpu.memory_space<vmem>>, vector<1x8x32xbf16>
    %39 = vector.shape_cast %38 : vector<1x8x32xbf16> to vector<8x32xbf16>
    %40 = vector.shape_cast %37 : vector<8x32xbf16> to vector<1x8x32xbf16>
    tpu.vector_store %arg8[%c0_18, %c0_19, %c0_20], %40 {strides = array<i32>} : memref<1x8x32xbf16, #tpu.memory_space<vmem>>, vector<1x8x32xbf16>,
    %41 = vector.extract_strided_slice %32 {offsets = [0, 64], sizes = [8, 32], strides = [1, 1]} : vector<8x96xbf16> to vector<8x32xbf16>
    %c0_21 = arith.constant 0 : index
    %c0_22 = arith.constant 0 : index
    %c0_23 = arith.constant 0 : index
    %42 = vector.load %arg9[%c0_21, %c0_22, %c0_23] : memref<1x8x32xbf16, #tpu.memory_space<vmem>>, vector<1x8x32xbf16>
    %43 = vector.shape_cast %42 : vector<1x8x32xbf16> to vector<8x32xbf16>
    %44 = vector.shape_cast %41 : vector<8x32xbf16> to vector<1x8x32xbf16>
    tpu.vector_store %arg9[%c0_21, %c0_22, %c0_23], %44 {strides = array<i32>} : memref<1x8x32xbf16, #tpu.memory_space<vmem>>, vector<1x8x32xbf16>,
    return
  }
  func.func @transform_0(%arg0: i32, %arg1: i32) -> (i32, i32, i32) {
    %c0_i32 = arith.constant 0 : i32
    %c0_i32_0 = arith.constant 0 : i32
    return %arg0, %arg1, %c0_i32 : i32, i32, i32
  }
  func.func @transform_1(%arg0: i32, %arg1: i32) -> (i32, i32) {
    %c0_i32 = arith.constant 0 : i32
    %c0_i32_0 = arith.constant 0 : i32
    %c0_i32_1 = arith.constant 0 : i32
    return %c0_i32, %c0_i32_0 : i32, i32
  }
  func.func @transform_2(%arg0: i32, %arg1: i32) -> (i32, i32) {
    %c0_i32 = arith.constant 0 : i32
    %c0_i32_0 = arith.constant 0 : i32
    %c0_i32_1 = arith.constant 0 : i32
    return %c0_i32, %c0_i32_0 : i32, i32
  }
  func.func @transform_3(%arg0: i32, %arg1: i32) -> (i32, i32) {
    %c0_i32 = arith.constant 0 : i32
    %c0_i32_0 = arith.constant 0 : i32
    %c0_i32_1 = arith.constant 0 : i32
    return %c0_i32, %c0_i32_0 : i32, i32
  }
  func.func @transform_4(%arg0: i32, %arg1: i32) -> (i32, i32) {
    %c0_i32 = arith.constant 0 : i32
    %c0_i32_0 = arith.constant 0 : i32
    %c0_i32_1 = arith.constant 0 : i32
    return %c0_i32, %c0_i32_0 : i32, i32
  }
  func.func @transform_5(%arg0: i32, %arg1: i32) -> (i32, i32, i32) {
    %c0_i32 = arith.constant 0 : i32
    %c0_i32_0 = arith.constant 0 : i32
    return %arg0, %arg1, %c0_i32 : i32, i32, i32
  }
  func.func @transform_6(%arg0: i32, %arg1: i32) -> (i32, i32, i32) {
    %c0_i32 = arith.constant 0 : i32
    %c0_i32_0 = arith.constant 0 : i32
    return %arg0, %arg1, %c0_i32 : i32, i32, i32
  }
  func.func @transform_7(%arg0: i32, %arg1: i32) -> (i32, i32, i32) {
    %c0_i32 = arith.constant 0 : i32
    %c0_i32_0 = arith.constant 0 : i32
    return %arg0, %arg1, %c0_i32 : i32, i32, i32
  }
}

module attributes {stable_mosaic.version = 11 : i64} {
  func.func @qkv_proj_kernel(%arg0: i32, %arg1: i32, %arg2: memref<1x8x32xf32, #tpu.memory_space<vmem>>, %arg3: memref<1x32xf32, #tpu.memory_space<vmem>>, %arg4: memref<1x32xf32, #tpu.memory_space<vmem>>, %arg5: memref<32x96xbf16, #tpu.memory_space<vmem>>, %arg6: memref<1x96xf32, #tpu.memory_space<vmem>>, %arg7: memref<1x8x32xbf16, #tpu.memory_space<vmem>>, %arg8: memref<1x8x32xbf16, #tpu.memory_space<vmem>>, %arg9: memref<1x8x32xbf16, #tpu.memory_space<vmem>>) attributes {dimension_semantics = [#tpu.dimension_semantics<parallel>, #tpu.dimension_semantics<parallel>], iteration_bounds = array<i64: 2, 1>, scalar_prefetch = 0 : i64, scratch_operands = 0 : i64, tpu.core_type = #tpu.core_type<tc>, window_params = [{transform_indices = @transform_0, window_bounds = array<i64: 1, 8, 32>}, {pipeline_mode = #tpu.pipeline_mode<synchronous>, transform_indices = @transform_1, window_bounds = array<i64: 1, 32>}, {pipeline_mode = #tpu.pipeline_mode<synchronous>, transform_indices = @transform_2, window_bounds = array<i64: 1, 32>}, {pipeline_mode = #tpu.pipeline_mode<synchronous>, transform_indices = @transform_3, window_bounds = array<i64: 32, 96>}, {pipeline_mode = #tpu.pipeline_mode<synchronous>, transform_indices = @transform_4, window_bounds = array<i64: 1, 96>}, {transform_indices = @transform_5, window_bounds = array<i64: 1, 8, 32>}, {transform_indices = @transform_6, window_bounds = array<i64: 1, 8, 32>}, {transform_indices = @transform_7, window_bounds = array<i64: 1, 8, 32>}]} {
    %c0 = arith.constant 0 : index
    %c0_0 = arith.constant 0 : index
    %c0_1 = arith.constant 0 : index
    %0 = vector.load %arg2[%c0, %c0_0, %c0_1] : memref<1x8x32xf32, #tpu.memory_space<vmem>>, vector<1x8x32xf32>
    %1 = vector.shape_cast %0 : vector<1x8x32xf32> to vector<8x32xf32>
    %c0_2 = arith.constant 0 : index
    %c0_3 = arith.constant 0 : index
    %2 = vector.load %arg3[%c0_2, %c0_3] : memref<1x32xf32, #tpu.memory_space<vmem>>, vector<1x32xf32>
    %c0_4 = arith.constant 0 : index
    %c0_5 = arith.constant 0 : index
    %3 = vector.load %arg4[%c0_4, %c0_5] : memref<1x32xf32, #tpu.memory_space<vmem>>, vector<1x32xf32>
    %cst = arith.constant dense<0.000000e+00> : vector<8xf32>
    %4 = vector.multi_reduction <add>, %1, %cst [1] : vector<8x32xf32> to vector<8xf32>
    %5 = vector.shape_cast %4 : vector<8xf32> to vector<8x1xf32>
    %cst_6 = arith.constant 3.125000e-02 : f32
    %6 = vector.broadcast %cst_6 : f32 to vector<8x1xf32>
    %7 = arith.mulf %5, %6 : vector<8x1xf32>
    %8 = arith.mulf %1, %1 : vector<8x32xf32>
    %cst_7 = arith.constant dense<0.000000e+00> : vector<8xf32>
    %9 = vector.multi_reduction <add>, %8, %cst_7 [1] : vector<8x32xf32> to vector<8xf32>
    %10 = vector.shape_cast %9 : vector<8xf32> to vector<8x1xf32>
    %cst_8 = arith.constant 3.125000e-02 : f32
    %11 = vector.broadcast %cst_8 : f32 to vector<8x1xf32>
    %12 = arith.mulf %10, %11 : vector<8x1xf32>
    %13 = arith.mulf %7, %7 : vector<8x1xf32>
    %14 = arith.subf %12, %13 : vector<8x1xf32>
    %15 = vector.broadcast %7 : vector<8x1xf32> to vector<8x32xf32>
    %16 = arith.subf %1, %15 : vector<8x32xf32>
    %cst_9 = arith.constant 9.99999974E-6 : f32
    %17 = vector.broadcast %cst_9 : f32 to vector<8x1xf32>
    %18 = arith.addf %14, %17 : vector<8x1xf32>
    %19 = math.rsqrt %18 : vector<8x1xf32>
    %20 = vector.broadcast %19 : vector<8x1xf32> to vector<8x32xf32>
    %21 = arith.mulf %16, %20 : vector<8x32xf32>
    %22 = vector.broadcast %2 : vector<1x32xf32> to vector<8x32xf32>
    %23 = arith.mulf %21, %22 : vector<8x32xf32>
    %24 = vector.broadcast %3 : vector<1x32xf32> to vector<8x32xf32>
    %25 = arith.addf %23, %24 : vector<8x32xf32>
    %26 = arith.truncf %25 : vector<8x32xf32> to vector<8x32xbf16>
    %c0_10 = arith.constant 0 : index
    %c0_11 = arith.constant 0 : index
    %27 = vector.load %arg5[%c0_10, %c0_11] : memref<32x96xbf16, #tpu.memory_space<vmem>>, vector<32x96xbf16>
    %cst_12 = arith.constant dense<0.000000e+00> : vector<8x96xf32>
    %28 = tpu.matmul %26, %27, %cst_12 {dimension_numbers = #tpu.dot_dimension_numbers<[1], [0], [0], [1], [0, 0, 1, 1], [], []>} : vector<8x32xbf16>, vector<32x96xbf16>, vector<8x96xf32> -> vector<8x96xf32>
    %c0_13 = arith.constant 0 : index
    %c0_14 = arith.constant 0 : index
    %29 = vector.load %arg6[%c0_13, %c0_14] : memref<1x96xf32, #tpu.memory_space<vmem>>, vector<1x96xf32>
    %30 = vector.broadcast %29 : vector<1x96xf32> to vector<8x96xf32>
    %31 = arith.addf %28, %30 : vector<8x96xf32>
    %32 = arith.truncf %31 : vector<8x96xf32> to vector<8x96xbf16>
    %33 = vector.extract_strided_slice %32 {offsets = [0, 0], sizes = [8, 32], strides = [1, 1]} : vector<8x96xbf16> to vector<8x32xbf16>
    %c0_15 = arith.constant 0 : index
    %c0_16 = arith.constant 0 : index
    %c0_17 = arith.constant 0 : index
    %34 = vector.load %arg7[%c0_15, %c0_16, %c0_17] : memref<1x8x32xbf16, #tpu.memory_space<vmem>>, vector<1x8x32xbf16>
    %35 = vector.shape_cast %34 : vector<1x8x32xbf16> to vector<8x32xbf16>
    %36 = vector.shape_cast %33 : vector<8x32xbf16> to vector<1x8x32xbf16>
    tpu.vector_store %arg7[%c0_15, %c0_16, %c0_17], %36 {strides = array<i32>} : memref<1x8x32xbf16, #tpu.memory_space<vmem>>, vector<1x8x32xbf16>,
    %37 = vector.extract_strided_slice %32 {offsets = [0, 32], sizes = [8, 32], strides = [1, 1]} : vector<8x96xbf16> to vector<8x32xbf16>
    %c0_18 = arith.constant 0 : index
    %c0_19 = arith.constant 0 : index
    %c0_20 = arith.constant 0 : index
    %38 = vector.load %arg8[%c0_18, %c0_19, %c0_20] : memref<1x8x32xbf16, #tpu.memory_space<vmem>>, vector<1x8x32xbf16>
    %39 = vector.shape_cast %38 : vector<1x8x32xbf16> to vector<8x32xbf16>
    %40 = vector.shape_cast %37 : vector<8x32xbf16> to vector<1x8x32xbf16>
    tpu.vector_store %arg8[%c0_18, %c0_19, %c0_20], %40 {strides = array<i32>} : memref<1x8x32xbf16, #tpu.memory_space<vmem>>, vector<1x8x32xbf16>,
    %41 = vector.extract_strided_slice %32 {offsets = [0, 64], sizes = [8, 32], strides = [1, 1]} : vector<8x96xbf16> to vector<8x32xbf16>
    %c0_21 = arith.constant 0 : index
    %c0_22 = arith.constant 0 : index
    %c0_23 = arith.constant 0 : index
    %42 = vector.load %arg9[%c0_21, %c0_22, %c0_23] : memref<1x8x32xbf16, #tpu.memory_space<vmem>>, vector<1x8x32xbf16>
    %43 = vector.shape_cast %42 : vector<1x8x32xbf16> to vector<8x32xbf16>
    %44 = vector.shape_cast %41 : vector<8x32xbf16> to vector<1x8x32xbf16>
    tpu.vector_store %arg9[%c0_21, %c0_22, %c0_23], %44 {strides = array<i32>} : memref<1x8x32xbf16, #tpu.memory_space<vmem>>, vector<1x8x32xbf16>,
    return
  }
  func.func @transform_0(%arg0: i32, %arg1: i32) -> (i32, i32, i32) {
    %c0_i32 = arith.constant 0 : i32
    %c0_i32_0 = arith.constant 0 : i32
    return %arg0, %arg1, %c0_i32 : i32, i32, i32
  }
  func.func @transform_1(%arg0: i32, %arg1: i32) -> (i32, i32) {
    %c0_i32 = arith.constant 0 : i32
    %c0_i32_0 = arith.constant 0 : i32
    %c0_i32_1 = arith.constant 0 : i32
    return %c0_i32, %c0_i32_0 : i32, i32
  }
  func.func @transform_2(%arg0: i32, %arg1: i32) -> (i32, i32) {
    %c0_i32 = arith.constant 0 : i32
    %c0_i32_0 = arith.constant 0 : i32
    %c0_i32_1 = arith.constant 0 : i32
    return %c0_i32, %c0_i32_0 : i32, i32
  }
  func.func @transform_3(%arg0: i32, %arg1: i32) -> (i32, i32) {
    %c0_i32 = arith.constant 0 : i32
    %c0_i32_0 = arith.constant 0 : i32
    %c0_i32_1 = arith.constant 0 : i32
    return %c0_i32, %c0_i32_0 : i32, i32
  }
  func.func @transform_4(%arg0: i32, %arg1: i32) -> (i32, i32) {
    %c0_i32 = arith.constant 0 : i32
    %c0_i32_0 = arith.constant 0 : i32
    %c0_i32_1 = arith.constant 0 : i32
    return %c0_i32, %c0_i32_0 : i32, i32
  }
  func.func @transform_5(%arg0: i32, %arg1: i32) -> (i32, i32, i32) {
    %c0_i32 = arith.constant 0 : i32
    %c0_i32_0 = arith.constant 0 : i32
    return %arg0, %arg1, %c0_i32 : i32, i32, i32
  }
  func.func @transform_6(%arg0: i32, %arg1: i32) -> (i32, i32, i32) {
    %c0_i32 = arith.constant 0 : i32
    %c0_i32_0 = arith.constant 0 : i32
    return %arg0, %arg1, %c0_i32 : i32, i32, i32
  }
  func.func @transform_7(%arg0: i32, %arg1: i32) -> (i32, i32, i32) {
    %c0_i32 = arith.constant 0 : i32
    %c0_i32_0 = arith.constant 0 : i32
    return %arg0, %arg1, %c0_i32 : i32, i32, i32
  }
}

</mosaic_0001>

<llo_original>
// kernel: tpu_custom_call.1
$region0: #{tpu_custom_call.1}
  #allocation0 [shape = 'u32[]', space=smem, size = 0x4, offset = 0x4, fixed_abs, tag = 'smem constant byte address 0x4 - core index']
  #allocation1 [shape = 'u32[144,128]{1,0:T(1,128)}', space=vmem, size = 0x12000, scoped, tag = 'internal scratch']
  %s0 = inlined_call_operand.hbm [shape: f32[2,8,32], index: 0, kind: input, shape index: {}]
  %s1 = inlined_call_operand.vmem [shape: f32[1,32], index: 1, kind: input, shape index: {}]
  %s2 = inlined_call_operand.vmem [shape: f32[1,32], index: 2, kind: input, shape index: {}]
  %s3 = inlined_call_operand.hbm [shape: bf16[32,96], index: 3, kind: input, shape index: {}]
  %s4 = inlined_call_operand.vmem [shape: f32[1,96], index: 4, kind: input, shape index: {}]
  %s5 = inlined_call_operand.hbm [shape: bf16[2,8,32], index: 5, kind: output, shape index: {0}]
  %s6 = inlined_call_operand.hbm [shape: bf16[2,8,32], index: 6, kind: output, shape index: {1}]
  %s7 = inlined_call_operand.hbm [shape: bf16[2,8,32], index: 7, kind: output, shape index: {2}]
  %8 = xla_tuple %s5, %s6, %s7
  %s9 = sld [smem:[#allocation0]]
  $region77: #{tpu_custom_call.1} parent=0
    _
  %s11 = ssub.s32 1, %s9
  %s12 = scalar_select 0, %s11, %s9
  $region1: #{tpu_custom_call.1} parent=0
    #allocation2 [shape = 'u8[8192]{0}', space=vmem, size = 0x2000, scoped, tag = 'input window, operand 0']
    #allocation3 [shape = 's32[2]{0}', space=sflag, size = 0x8, scoped, tag = 'scoped memory for tpu_custom_call.1']
    #allocation4 [shape = 's32[2]{0}', space=sflag, size = 0x8, scoped, tag = 'scoped memory for tpu_custom_call.1']
    #allocation5 [shape = 'u8[8192]{0}', space=vmem, size = 0x2000, scoped, tag = 'input window, operand 3, single buffered']
    #allocation6 [shape = 's32[1]{0}', space=sflag, size = 0x4, scoped, tag = 'scoped memory for tpu_custom_call.1']
    #allocation7 [shape = 'u8[4096]{0}', space=vmem, size = 0x1000, scoped, tag = 'output window, operand 0']
    #allocation8 [shape = 'u8[4096]{0}', space=vmem, size = 0x1000, scoped, tag = 'output window, operand 1']
    #allocation9 [shape = 's32[2]{0}', space=sflag, size = 0x8, scoped, tag = 'scoped memory for tpu_custom_call.1']
    #allocation10 [shape = 'u8[4096]{0}', space=vmem, size = 0x1000, scoped, tag = 'output window, operand 2']
    %13 = vsyncpa [#allocation3], 0
    %s14 = scalar_lea.sflag [#allocation3], 1
    %15 = vsyncpa %s14, 0
    %16 = vsyncpa [#allocation6], 0
    %17 = vsyncpa [#allocation4], 0
    %s18 = scalar_lea.sflag [#allocation4], 1
    %19 = vsyncpa %s18, 0
    %20 = vsyncpa [#allocation9], 0
    %s21 = scalar_lea.sflag [#allocation9], 1
    %22 = vsyncpa %s21, 0
    loop: start=0, step=1, limit=4
    $region2: #{tpu_custom_call.1} parent=1 // loop_pre_header
      _
    $region3: #{tpu_custom_call.1} parent=1 // loop_header
      %s24 = sphi 0, %s28
      %p25 = scmp.ge.s32.totalorder %s24, 4
      %s31 = sphi 0, %s43
      %s32 = sphi 0, %s39
      %s33 = sphi 0, %s31
      %s34 = sphi 0, %s32
      %s35 = sphi 0, %s33
      %s36 = sphi 0, %s34
      %s48 = sphi 0, %s50
      %s51 = sphi 0, %s48
      %s52 = sphi 0, %s51
      %s68 = sphi 0, %s52
      %s72 = sphi 0, %s72
      %s74 = sphi 0, %s72
      %s75 = sphi 0, %s74
      %s89 = sphi 0, %s75
      %s93 = sphi 0, %s93
      %s95 = sphi 0, %s93
      %s96 = sphi 0, %s95
      %s110 = sphi 0, %s96
      %s114 = sphi 0, %s114
      %s116 = sphi 0, %s114
      %s117 = sphi 0, %s116
      %s131 = sphi 0, %s117
      %s135 = sphi 0, %s135
      %s137 = sphi 0, %s135
      %s138 = sphi 0, %s137
      %s152 = sphi 0, %s138
      %s160 = sphi 0, %s162
      %s163 = sphi 0, %s160
      %s164 = sphi 0, %s163
      %s180 = sphi 0, %s164
      %s188 = sphi 0, %s190
      %s191 = sphi 0, %s188
      %s192 = sphi 0, %s191
      %s208 = sphi 0, %s192
      %s216 = sphi 0, %s218
      %s219 = sphi 0, %s216
      %s220 = sphi 0, %s219
      %s236 = sphi 0, %s220
    $region4: #{tpu_custom_call.1} parent=1 // loop_header_branch
      %27 = sbr.rel (%p25) target = $region8
    $region5: #{tpu_custom_call.1} parent=1 // loop_body
      %s29 = ssub.s32 %s24, 1
      %s30 = ssub.s32 %s24, 2
      %s37 = sadd.s32 1, %s32
      %p38 = scmp.ge.s32.totalorder %s37, 1
      %s39 = scalar_select %p38, 0, %s37
      %s40 = sadd.s32 1, %s31
      %s41 = scalar_select %p38, %s40, %s31
      %p42 = scmp.ge.s32.totalorder %s41, 2
      %s43 = scalar_select %p42, 0, %s41
      %s44 = ssub.s32 %s31, %s43
      %s45 = ssub.s32 %s32, %s39
      %s46 = sor.u32 %s44, %s45
      %p47 = scmp.eq.s32.totalorder %s46, 0
      %s49 = sadd.s32 %s48, 1
      %s50 = scalar_select %p47, %s48, %s49
      %p53 = pneg %p47
      %p54 = scmp.eq.s32.totalorder %s24, 1
      %p55 = por %p53, %p54
      %p56 = scmp.ne.s32.totalorder %s48, %s51
      %p57 = scmp.eq.s32.totalorder %s24, 0
      %p58 = por %p56, %p57
      %p59 = scmp.ne.s32.totalorder %s48, %s51
      %p60 = scmp.eq.s32.totalorder %s29, 1
      %p61 = por %p59, %p60
      %p62 = scmp.ne.s32.totalorder %s51, %s52
      %p63 = scmp.eq.s32.totalorder %s29, 0
      %p64 = por %p62, %p63
      %p65 = scmp.ne.s32.totalorder %s51, %s52
      %p66 = scmp.eq.s32.totalorder %s30, 1
      %p67 = por %p65, %p66
      %p69 = scmp.ne.s32.totalorder %s52, %s68
      %p70 = scmp.eq.s32.totalorder %s30, 0
      %p71 = por %p69, %p70
      %s73 = sadd.s32 %s72, 1
      %p76 = scmp.eq.s32.totalorder %s24, 1
      %p77 = scmp.ne.s32.totalorder %s72, %s74
      %p78 = scmp.eq.s32.totalorder %s24, 0
      %p79 = por %p77, %p78
      %p80 = scmp.ne.s32.totalorder %s72, %s74
      %p81 = scmp.eq.s32.totalorder %s29, 1
      %p82 = por %p80, %p81
      %p83 = scmp.ne.s32.totalorder %s74, %s75
      %p84 = scmp.eq.s32.totalorder %s29, 0
      %p85 = por %p83, %p84
      %p86 = scmp.ne.s32.totalorder %s74, %s75
      %p87 = scmp.eq.s32.totalorder %s30, 1
      %p88 = por %p86, %p87
      %p90 = scmp.ne.s32.totalorder %s75, %s89
      %p91 = scmp.eq.s32.totalorder %s30, 0
      %p92 = por %p90, %p91
      %s94 = sadd.s32 %s93, 1
      %p97 = scmp.eq.s32.totalorder %s24, 1
      %p98 = scmp.ne.s32.totalorder %s93, %s95
      %p99 = scmp.eq.s32.totalorder %s24, 0
      %p100 = por %p98, %p99
      %p101 = scmp.ne.s32.totalorder %s93, %s95
      %p102 = scmp.eq.s32.totalorder %s29, 1
      %p103 = por %p101, %p102
      %p104 = scmp.ne.s32.totalorder %s95, %s96
      %p105 = scmp.eq.s32.totalorder %s29, 0
      %p106 = por %p104, %p105
      %p107 = scmp.ne.s32.totalorder %s95, %s96
      %p108 = scmp.eq.s32.totalorder %s30, 1
      %p109 = por %p107, %p108
      %p111 = scmp.ne.s32.totalorder %s96, %s110
      %p112 = scmp.eq.s32.totalorder %s30, 0
      %p113 = por %p111, %p112
      %s115 = sadd.s32 %s114, 1
      %p118 = scmp.eq.s32.totalorder %s24, 1
      %p119 = scmp.ne.s32.totalorder %s114, %s116
      %p120 = scmp.eq.s32.totalorder %s24, 0
      %p121 = por %p119, %p120
      %p122 = scmp.ne.s32.totalorder %s114, %s116
      %p123 = scmp.eq.s32.totalorder %s29, 1
      %p124 = por %p122, %p123
      %p125 = scmp.ne.s32.totalorder %s116, %s117
      %p126 = scmp.eq.s32.totalorder %s29, 0
      %p127 = por %p125, %p126
      %p128 = scmp.ne.s32.totalorder %s116, %s117
      %p129 = scmp.eq.s32.totalorder %s30, 1
      %p130 = por %p128, %p129
      %p132 = scmp.ne.s32.totalorder %s117, %s131
      %p133 = scmp.eq.s32.totalorder %s30, 0
      %p134 = por %p132, %p133
      %s136 = sadd.s32 %s135, 1
      %p139 = scmp.eq.s32.totalorder %s24, 1
      %p140 = scmp.ne.s32.totalorder %s135, %s137
      %p141 = scmp.eq.s32.totalorder %s24, 0
      %p142 = por %p140, %p141
      %p143 = scmp.ne.s32.totalorder %s135, %s137
      %p144 = scmp.eq.s32.totalorder %s29, 1
      %p145 = por %p143, %p144
      %p146 = scmp.ne.s32.totalorder %s137, %s138
      %p147 = scmp.eq.s32.totalorder %s29, 0
      %p148 = por %p146, %p147
      %p149 = scmp.ne.s32.totalorder %s137, %s138
      %p150 = scmp.eq.s32.totalorder %s30, 1
      %p151 = por %p149, %p150
      %p153 = scmp.ne.s32.totalorder %s138, %s152
      %p154 = scmp.eq.s32.totalorder %s30, 0
      %p155 = por %p153, %p154
      %s156 = ssub.s32 %s31, %s43
      %s157 = ssub.s32 %s32, %s39
      %s158 = sor.u32 %s156, %s157
      %p159 = scmp.eq.s32.totalorder %s158, 0
      %s161 = sadd.s32 %s160, 1
      %s162 = scalar_select %p159, %s160, %s161
      %p165 = pneg %p159
      %p166 = scmp.eq.s32.totalorder %s24, 1
      %p167 = por %p165, %p166
      %p168 = scmp.ne.s32.totalorder %s160, %s163
      %p169 = scmp.eq.s32.totalorder %s24, 0
      %p170 = por %p168, %p169
      %p171 = scmp.ne.s32.totalorder %s160, %s163
      %p172 = scmp.eq.s32.totalorder %s29, 1
      %p173 = por %p171, %p172
      %p174 = scmp.ne.s32.totalorder %s163, %s164
      %p175 = scmp.eq.s32.totalorder %s29, 0
      %p176 = por %p174, %p175
      %p177 = scmp.ne.s32.totalorder %s163, %s164
      %p178 = scmp.eq.s32.totalorder %s30, 1
      %p179 = por %p177, %p178
      %p181 = scmp.ne.s32.totalorder %s164, %s180
      %p182 = scmp.eq.s32.totalorder %s30, 0
      %p183 = por %p181, %p182
      %s184 = ssub.s32 %s31, %s43
      %s185 = ssub.s32 %s32, %s39
      %s186 = sor.u32 %s184, %s185
      %p187 = scmp.eq.s32.totalorder %s186, 0
      %s189 = sadd.s32 %s188, 1
      %s190 = scalar_select %p187, %s188, %s189
      %p193 = pneg %p187
      %p194 = scmp.eq.s32.totalorder %s24, 1
      %p195 = por %p193, %p194
      %p196 = scmp.ne.s32.totalorder %s188, %s191
      %p197 = scmp.eq.s32.totalorder %s24, 0
      %p198 = por %p196, %p197
      %p199 = scmp.ne.s32.totalorder %s188, %s191
      %p200 = scmp.eq.s32.totalorder %s29, 1
      %p201 = por %p199, %p200
      %p202 = scmp.ne.s32.totalorder %s191, %s192
      %p203 = scmp.eq.s32.totalorder %s29, 0
      %p204 = por %p202, %p203
      %p205 = scmp.ne.s32.totalorder %s191, %s192
      %p206 = scmp.eq.s32.totalorder %s30, 1
      %p207 = por %p205, %p206
      %p209 = scmp.ne.s32.totalorder %s192, %s208
      %p210 = scmp.eq.s32.totalorder %s30, 0
      %p211 = por %p209, %p210
      %s212 = ssub.s32 %s31, %s43
      %s213 = ssub.s32 %s32, %s39
      %s214 = sor.u32 %s212, %s213
      %p215 = scmp.eq.s32.totalorder %s214, 0
      %s217 = sadd.s32 %s216, 1
      %s218 = scalar_select %p215, %s216, %s217
      %p221 = pneg %p215
      %p222 = scmp.eq.s32.totalorder %s24, 1
      %p223 = por %p221, %p222
      %p224 = scmp.ne.s32.totalorder %s216, %s219
      %p225 = scmp.eq.s32.totalorder %s24, 0
      %p226 = por %p224, %p225
      %p227 = scmp.ne.s32.totalorder %s216, %s219
      %p228 = scmp.eq.s32.totalorder %s29, 1
      %p229 = por %p227, %p228
      %p230 = scmp.ne.s32.totalorder %s219, %s220
      %p231 = scmp.eq.s32.totalorder %s29, 0
      %p232 = por %p230, %p231
      %p233 = scmp.ne.s32.totalorder %s219, %s220
      %p234 = scmp.eq.s32.totalorder %s30, 1
      %p235 = por %p233, %p234
      %p237 = scmp.ne.s32.totalorder %s220, %s236
      %p238 = scmp.eq.s32.totalorder %s30, 0
      %p239 = por %p237, %p238
      %p240 = scmp.le.s32.totalorder 1, %s24
      %p241 = scmp.lt.s32.totalorder %s24, 3
      %p242 = pnand %p240, %p241
      %p243 = pneg %p242
      // Predicated region
      $region9: #{tpu_custom_call.1} parent=5 // pred_check
        _
      $region10: #{tpu_custom_call.1} parent=5 // pred_check_branch
        %245 = sbr.rel (%p242) target = $region12
      $region11: #{tpu_custom_call.1} parent=5 // pred_region
        %s246 = ssub.s32 %s24, 1
        // Predicated region
        $region13: #{tpu_custom_call.1} parent=11 // pred_check
          %p247 = pneg %p85
        $region14: #{tpu_custom_call.1} parent=11 // pred_check_branch
          %249 = sbr.rel (%p247) target = $region16
        $region15: #{tpu_custom_call.1} parent=11 // pred_region
          _
        $region16: #{tpu_custom_call.1} parent=11 // pred_fallthru
          _
        // Predicated region
        $region17: #{tpu_custom_call.1} parent=11 // pred_check
          %p250 = pneg %p106
        $region18: #{tpu_custom_call.1} parent=11 // pred_check_branch
          %252 = sbr.rel (%p250) target = $region20
        $region19: #{tpu_custom_call.1} parent=11 // pred_region
          _
        $region20: #{tpu_custom_call.1} parent=11 // pred_fallthru
          _
        // Predicated region
        $region21: #{tpu_custom_call.1} parent=11 // pred_check
          %p253 = pneg %p127
        $region22: #{tpu_custom_call.1} parent=11 // pred_check_branch
          %255 = sbr.rel (%p253) target = $region24
        $region23: #{tpu_custom_call.1} parent=11 // pred_region
          %s257 = ssub.s32 256, 256
          %258 = vsyncadd [#allocation6], %s257
          %s259 = sshll.u32 [#allocation5], 4
          %s260 = int_to_ptr.vmem [resolvable:$true] %s259
          %265 = dma.hbm_to_vmem [thread:$0]  %s3, 256, %s260, [#allocation6], 64, 64, 4
        $region24: #{tpu_custom_call.1} parent=11 // pred_fallthru
          _
        // Predicated region
        $region25: #{tpu_custom_call.1} parent=11 // pred_check
          %p266 = pneg %p148
        $region26: #{tpu_custom_call.1} parent=11 // pred_check_branch
          %268 = sbr.rel (%p266) target = $region28
        $region27: #{tpu_custom_call.1} parent=11 // pred_region
          _
        $region28: #{tpu_custom_call.1} parent=11 // pred_fallthru
          _
      $region12: #{tpu_custom_call.1} parent=5 // pred_fallthru
        _
      %p269 = scmp.lt.s32.totalorder %s24, 2
      // Predicated region
      $region29: #{tpu_custom_call.1} parent=5 // pred_check
        %p270 = pneg %p269
      $region30: #{tpu_custom_call.1} parent=5 // pred_check_branch
        %272 = sbr.rel (%p270) target = $region32
      $region31: #{tpu_custom_call.1} parent=5 // pred_region
        // Predicated region
        $region33: #{tpu_custom_call.1} parent=31 // pred_check
          %p273 = pneg %p58
        $region34: #{tpu_custom_call.1} parent=31 // pred_check_branch
          %275 = sbr.rel (%p273) target = $region36
        $region35: #{tpu_custom_call.1} parent=31 // pred_region
          %s276 = sand.u32 %s48, 1
          %s277 = scalar_lea.sflag [#allocation3], %s276
          %s278 = sand.u32 %s48, 1
          %s279 = smul.addr %s278, 8
          %s280 = scalar_lea.vmem [#allocation2], %s279
          %s282 = ssub.s32 128, 128
          %283 = vsyncadd %s277, %s282
          %s284 = sadd.s32 %s32, %s31
          %s285 = smul.addr %s284, 128
          %s286 = scalar_lea.hbm %s0, %s285
          %s288 = sshll.u32 %s280, 4
          %s289 = int_to_ptr.vmem [resolvable:$true] %s288
          %291 = dma.hbm_to_vmem [thread:$0]  %s286, 128, %s289, %s277
        $region36: #{tpu_custom_call.1} parent=31 // pred_fallthru
          _
      $region32: #{tpu_custom_call.1} parent=5 // pred_fallthru
        _
      %p292 = scmp.le.s32.totalorder 1, %s24
      %p293 = scmp.lt.s32.totalorder %s24, 3
      %p294 = pnand %p292, %p293
      %p295 = pneg %p294
      // Predicated region
      $region37: #{tpu_custom_call.1} parent=5 // pred_check
        _
      $region38: #{tpu_custom_call.1} parent=5 // pred_check_branch
        %297 = sbr.rel (%p294) target = $region40
      $region39: #{tpu_custom_call.1} parent=5 // pred_region
        %s298 = ssub.s32 %s24, 1
        %s299 = sand.u32 %s51, 1
        %s300 = scalar_lea.sflag [#allocation3], %s299
        %s301 = sand.u32 %s51, 1
        %s302 = smul.addr %s301, 8
        %s303 = scalar_lea.vmem [#allocation2], %s302
        // Predicated region
        $region41: #{tpu_custom_call.1} parent=39 // pred_check
          %p304 = pneg %p64
        $region42: #{tpu_custom_call.1} parent=39 // pred_check_branch
          %306 = sbr.rel (%p304) target = $region44
        $region43: #{tpu_custom_call.1} parent=39 // pred_region
          %307 = dma.done %s300, 128
        $region44: #{tpu_custom_call.1} parent=39 // pred_fallthru
          _
        // Predicated region
        $region45: #{tpu_custom_call.1} parent=39 // pred_check
          %p308 = pneg %p127
        $region46: #{tpu_custom_call.1} parent=39 // pred_check_branch
          %310 = sbr.rel (%p308) target = $region48
        $region47: #{tpu_custom_call.1} parent=39 // pred_region
          %311 = dma.done [#allocation6], 256
        $region48: #{tpu_custom_call.1} parent=39 // pred_fallthru
          _
        %s312 = sand.u32 %s51, 1
        %s313 = scalar_lea.sflag [#allocation3], %s312
        %s314 = sand.u32 %s51, 1
        %s315 = smul.addr %s314, 8
        %s316 = scalar_lea.vmem [#allocation2], %s315
        %p317 = pneg %p64
        %p318 = pneg %p61
        %p319 = pneg %p85
        %p320 = pneg %p82
        %p321 = pneg %p106
        %p322 = pneg %p103
        %p323 = pneg %p127
        %p324 = pneg %p124
        %p325 = pneg %p148
        %p326 = pneg %p145
        %p327 = pneg %p176
        %p328 = pneg %p173
        %s329 = sand.u32 %s163, 1
        %s330 = scalar_lea.sflag [#allocation4], %s329
        %s331 = sand.u32 %s163, 1
        %s332 = smul.addr %s331, 4
        %s333 = scalar_lea.vmem [#allocation7], %s332
        %p334 = pneg %p204
        %p335 = pneg %p201
        %s336 = sand.u32 %s29, 1
        %s337 = scalar_lea.sflag [#allocation9], %s336
        %s338 = sand.u32 %s191, 1
        %s339 = smul.addr %s338, 4
        %s340 = scalar_lea.vmem [#allocation8], %s339
        %p341 = pneg %p232
        %p342 = pneg %p229
        %s343 = sand.u32 %s29, 1
        %s344 = scalar_lea.sflag [#allocation9], %s343
        %s345 = sand.u32 %s219, 1
        %s346 = smul.addr %s345, 4
        %s347 = scalar_lea.vmem [#allocation10], %s346
        %v349 = vld [vmem:[%s303] sm:$0xff]
        %v350 = vld [vmem:[%s1] sm:$0x1]
        %v351 = vld [vmem:[%s2] sm:$0x1]
        %vm352 = vcmask 261120
        %v353 = vsel %vm352, %v349, 0.0
        %354 = vadd.xlane.f32.xlu0 %v353
        %v355 = vpop.xlane.xlu0 %354
        %v356 = vmul.f32 %v355, 0.03125
        %v357 = vmul.f32 %v349, %v349
        %v358 = vsel %vm352, %v357, 0.0
        %359 = vadd.xlane.f32.xlu0 %v358
        %v360 = vpop.xlane.xlu0 %359
        %v361 = vmul.f32 %v360, 0.03125
        %v362 = vmul.f32 %v356, %v356
        %v363 = vsub.f32 %v361, %v362
        %v364 = vsub.f32 %v349, %v356
        %v365 = vadd.f32 %v363, 1e-05
        %v366 = vrsqrt.pop %v365
        %v367 = vmul.f32 %v364, %v366
        %v369 = vlaneseq
        %v370 = vshrl.u32 %v369, 7
        %v371 = vsub.s32 0, %v370
        %v372 = vrot.slane %v350, %v371
        %v374 = vmul.f32 %v367, %v372
        %v376 = vlaneseq
        %v377 = vshrl.u32 %v376, 7
        %v378 = vsub.s32 0, %v377
        %v379 = vrot.slane %v351, %v378
        %v381 = vadd.f32 %v374, %v379
        %v382 = vpack.c.bf16 %v381, %v381
        %v383 = vld [vmem:[#allocation5] sm:$0xf]
        %v384 = vld [vmem:[#allocation5 + $0x4] sm:$0xf]
        %v385 = vld [vmem:[#allocation5 + $0x8] sm:$0xf]
        %v386 = vld [vmem:[#allocation5 + $0xc] sm:$0xf]
        %v387 = vld [vmem:[%s4] sm:$0x1]
        %v389 = vlaneseq
        %v390 = vshrl.u32 %v389, 7
        %v391 = vsub.s32 0, %v390
        %v392 = vrot.slane %v387, %v391
        %v398 = vunpack.c.l.b16 %v383
        %v399 = vunpack.c.l.b16 %v384
        %v400 = vunpack.c.l.b16 %v385
        %v401 = vunpack.c.l.b16 %v386
        %v402 = vpack.c.b16 %v399, %v398
        %v403 = vpack.c.b16 %v401, %v400
        %v407 = vsel %vm352, %v382, 0
        %409 = vmatprep.subr.bf16.mxu0 0
        %410 = vmatpush1.bf16.msra.mxu0 %v402
        %411 = vmatprep.subr.bf16.mxu0 0
        %412 = vmatpush1.bf16.msra.mxu0 %v403
        %413 = vmatprep.subr.bf16.mxu0 0
        %414 = vmatpush1.bf16.msra.mxu0 0
        %415 = vmatprep.subr.bf16.mxu0 0
        %416 = vmatpush1.bf16.msra.mxu0 0
        %417 = vmatprep.subr.bf16.mxu0 0
        %418 = vmatpush1.bf16.msra.mxu0 0
        %419 = vmatprep.subr.bf16.mxu0 0
        %420 = vmatpush1.bf16.msra.mxu0 0
        %421 = vmatprep.subr.bf16.mxu0 0
        %422 = vmatpush1.bf16.msra.mxu0 0
        %423 = vmatprep.subr.bf16.mxu0 0
        %424 = vmatpush1.bf16.msra.mxu0 0
        %425 = vmatprep.subr.bf16.mxu0 0
        %426 = vmatpush1.bf16.msra.mxu0 0
        %427 = vmatprep.subr.bf16.mxu0 0
        %428 = vmatpush1.bf16.msra.mxu0 0
        %429 = vmatprep.subr.bf16.mxu0 0
        %430 = vmatpush1.bf16.msra.mxu0 0
        %431 = vmatprep.subr.bf16.mxu0 0
        %432 = vmatpush1.bf16.msra.mxu0 0
        %433 = vmatprep.subr.bf16.mxu0 0
        %434 = vmatpush1.bf16.msra.mxu0 0
        %435 = vmatprep.subr.bf16.mxu0 0
        %436 = vmatpush1.bf16.msra.mxu0 0
        %437 = vmatprep.subr.bf16.mxu0 0
        %438 = vmatpush1.bf16.msra.mxu0 0
        %439 = vmatprep.subr.bf16.mxu0 0
        %440 = vmatpush1.bf16.msra.mxu0 0
        %441 = vmatprep.mubr.bf16.mxu0 0
        %442 = vmatmul.mubr.bf16.gmra.mrb[0].mxu0 %v407
        %v443 = vpop.f32.mrb[0].mxu0
        %v444 = vadd.f32 %v392, %v443
        %v445 = vpop.f32.mrb[0].mxu0
        %v446 = vpop.f32.mrb[0].mxu0
        %v447 = vpop.f32.mrb[0].mxu0
        %448 = vdwg.mxu0
        %v449 = vpack.c.bf16 %v444, %v444
        %vm450 = vcmask 257024
        %451 = vst.msk [vmem:[%s333] sm:$0xf] %vm450, %v449
        %v453 = vunpack.c.l.b16 %v449
        %v454 = vpack.c.b16 %v453, %v453
        %455 = vrot.lane.b32.xlu0 %v454, 96
        %v456 = vpop.permute.xlu0 %455
        %458 = vst.msk [vmem:[%s340] sm:$0xf] %vm450, %v456
        %459 = vrot.lane.b32.xlu0 %v454, 64
        %v460 = vpop.permute.xlu0 %459
        %462 = vst.msk [vmem:[%s347] sm:$0xf] %vm450, %v460
        %s463 = sand.u32 %s163, 1
        %s464 = scalar_lea.sflag [#allocation4], %s463
        %s465 = sand.u32 %s163, 1
        %s466 = smul.addr %s465, 4
        %s467 = scalar_lea.vmem [#allocation7], %s466
        %s468 = sand.u32 %s29, 1
        %s469 = scalar_lea.sflag [#allocation9], %s468
        %s470 = sand.u32 %s191, 1
        %s471 = smul.addr %s470, 4
        %s472 = scalar_lea.vmem [#allocation8], %s471
        %s473 = sand.u32 %s29, 1
        %s474 = scalar_lea.sflag [#allocation9], %s473
        %s475 = sand.u32 %s219, 1
        %s476 = smul.addr %s475, 4
        %s477 = scalar_lea.vmem [#allocation10], %s476
        // Predicated region
        $region49: #{tpu_custom_call.1} parent=39 // pred_check
          %p478 = pneg %p173
        $region50: #{tpu_custom_call.1} parent=39 // pred_check_branch
          %480 = sbr.rel (%p478) target = $region52
        $region51: #{tpu_custom_call.1} parent=39 // pred_region
          %s482 = ssub.s32 64, 64
          %483 = vsyncadd %s464, %s482
          %s484 = sadd.s32 %s34, %s33
          %s485 = smul.addr %s484, 64
          %s486 = scalar_lea.hbm %s5, %s485
          %s488 = sshll.u32 %s467, 4
          %s489 = int_to_ptr.vmem [resolvable:$true] %s488
          %491 = dma.vmem_to_hbm [thread:$0]  %s489, 64, %s486, %s464
        $region52: #{tpu_custom_call.1} parent=39 // pred_fallthru
          _
        // Predicated region
        $region53: #{tpu_custom_call.1} parent=39 // pred_check
          %p492 = pneg %p201
        $region54: #{tpu_custom_call.1} parent=39 // pred_check_branch
          %494 = sbr.rel (%p492) target = $region56
        $region55: #{tpu_custom_call.1} parent=39 // pred_region
          %s496 = ssub.s32 64, 64
          %497 = vsyncadd %s469, %s496
          %s498 = sadd.s32 %s34, %s33
          %s499 = smul.addr %s498, 64
          %s500 = scalar_lea.hbm %s6, %s499
          %s502 = sshll.u32 %s472, 4
          %s503 = int_to_ptr.vmem [resolvable:$true] %s502
          %505 = dma.vmem_to_hbm [thread:$0]  %s503, 64, %s500, %s469
        $region56: #{tpu_custom_call.1} parent=39 // pred_fallthru
          _
        // Predicated region
        $region57: #{tpu_custom_call.1} parent=39 // pred_check
          %p506 = pneg %p229
        $region58: #{tpu_custom_call.1} parent=39 // pred_check_branch
          %508 = sbr.rel (%p506) target = $region60
        $region59: #{tpu_custom_call.1} parent=39 // pred_region
          %s510 = ssub.s32 64, 64
          %511 = vsyncadd %s474, %s510
          %s512 = sadd.s32 %s34, %s33
          %s513 = smul.addr %s512, 64
          %s514 = scalar_lea.hbm %s7, %s513
          %s516 = sshll.u32 %s477, 4
          %s517 = int_to_ptr.vmem [resolvable:$true] %s516
          %519 = dma.vmem_to_hbm [thread:$0]  %s517, 64, %s514, %s474
        $region60: #{tpu_custom_call.1} parent=39 // pred_fallthru
          _
      $region40: #{tpu_custom_call.1} parent=5 // pred_fallthru
        _
      %p520 = scmp.le.s32.totalorder 2, %s24
      // Predicated region
      $region61: #{tpu_custom_call.1} parent=5 // pred_check
        %p521 = pneg %p520
      $region62: #{tpu_custom_call.1} parent=5 // pred_check_branch
        %523 = sbr.rel (%p521) target = $region64
      $region63: #{tpu_custom_call.1} parent=5 // pred_region
        %s524 = ssub.s32 %s24, 2
        // Predicated region
        $region65: #{tpu_custom_call.1} parent=63 // pred_check
          %p525 = pneg %p179
        $region66: #{tpu_custom_call.1} parent=63 // pred_check_branch
          %527 = sbr.rel (%p525) target = $region68
        $region67: #{tpu_custom_call.1} parent=63 // pred_region
          %s528 = sand.u32 %s164, 1
          %s529 = scalar_lea.sflag [#allocation4], %s528
          %s530 = sand.u32 %s164, 1
          %s531 = smul.addr %s530, 4
          %s532 = scalar_lea.vmem [#allocation7], %s531
          %533 = dma.done %s529, 64
        $region68: #{tpu_custom_call.1} parent=63 // pred_fallthru
          _
        // Predicated region
        $region69: #{tpu_custom_call.1} parent=63 // pred_check
          %p534 = pneg %p207
        $region70: #{tpu_custom_call.1} parent=63 // pred_check_branch
          %536 = sbr.rel (%p534) target = $region72
        $region71: #{tpu_custom_call.1} parent=63 // pred_region
          %s537 = sand.u32 %s30, 1
          %s538 = scalar_lea.sflag [#allocation9], %s537
          %s539 = sand.u32 %s192, 1
          %s540 = smul.addr %s539, 4
          %s541 = scalar_lea.vmem [#allocation8], %s540
          %542 = dma.done %s538, 64
        $region72: #{tpu_custom_call.1} parent=63 // pred_fallthru
          _
        // Predicated region
        $region73: #{tpu_custom_call.1} parent=63 // pred_check
          %p543 = pneg %p235
        $region74: #{tpu_custom_call.1} parent=63 // pred_check_branch
          %545 = sbr.rel (%p543) target = $region76
        $region75: #{tpu_custom_call.1} parent=63 // pred_region
          %s546 = sand.u32 %s30, 1
          %s547 = scalar_lea.sflag [#allocation9], %s546
          %s548 = sand.u32 %s220, 1
          %s549 = smul.addr %s548, 4
          %s550 = scalar_lea.vmem [#allocation10], %s549
          %551 = dma.done %s547, 64
        $region76: #{tpu_custom_call.1} parent=63 // pred_fallthru
          _
      $region64: #{tpu_custom_call.1} parent=5 // pred_fallthru
        _
    $region6: #{tpu_custom_call.1} parent=1 // loop_footer
      %s28 = sadd.s32 1, %s24
    $region7: #{tpu_custom_call.1} parent=1 // loop_footer_branch
      %23 = sbr.rel target = $region3
    $region8: #{tpu_custom_call.1} parent=1 // loop_exit
      _
    %552 = vsyncpa [#allocation3], 1
    %s553 = scalar_lea.sflag [#allocation3], 1
    %554 = vsyncpa %s553, 1
    %555 = vsyncpa [#allocation6], 1
    %556 = vsyncpa [#allocation4], 1
    %s557 = scalar_lea.sflag [#allocation4], 1
    %558 = vsyncpa %s557, 1
    %559 = vsyncpa [#allocation9], 1
    %s560 = scalar_lea.sflag [#allocation9], 1
    %561 = vsyncpa %s560, 1

// kernel: tpu_custom_call.1
$region0: #{tpu_custom_call.1}
  #allocation0 [shape = 'u32[]', space=smem, size = 0x4, offset = 0x4, fixed_abs, tag = 'smem constant byte address 0x4 - core index']
  #allocation1 [shape = 'u32[144,128]{1,0:T(1,128)}', space=vmem, size = 0x12000, scoped, tag = 'internal scratch']
  %s0 = inlined_call_operand.hbm [shape: f32[2,8,32], index: 0, kind: input, shape index: {}]
  %s1 = inlined_call_operand.vmem [shape: f32[1,32], index: 1, kind: input, shape index: {}]
  %s2 = inlined_call_operand.vmem [shape: f32[1,32], index: 2, kind: input, shape index: {}]
  %s3 = inlined_call_operand.hbm [shape: bf16[32,96], index: 3, kind: input, shape index: {}]
  %s4 = inlined_call_operand.vmem [shape: f32[1,96], index: 4, kind: input, shape index: {}]
  %s5 = inlined_call_operand.hbm [shape: bf16[2,8,32], index: 5, kind: output, shape index: {0}]
  %s6 = inlined_call_operand.hbm [shape: bf16[2,8,32], index: 6, kind: output, shape index: {1}]
  %s7 = inlined_call_operand.hbm [shape: bf16[2,8,32], index: 7, kind: output, shape index: {2}]
  %8 = xla_tuple %s5, %s6, %s7
  %s9 = sld [smem:[#allocation0]]
  $region77: #{tpu_custom_call.1} parent=0
    _
  %s11 = ssub.s32 1, %s9
  %s12 = scalar_select 0, %s11, %s9
  $region1: #{tpu_custom_call.1} parent=0
    #allocation2 [shape = 'u8[8192]{0}', space=vmem, size = 0x2000, scoped, tag = 'input window, operand 0']
    #allocation3 [shape = 's32[2]{0}', space=sflag, size = 0x8, scoped, tag = 'scoped memory for tpu_custom_call.1']
    #allocation4 [shape = 's32[2]{0}', space=sflag, size = 0x8, scoped, tag = 'scoped memory for tpu_custom_call.1']
    #allocation5 [shape = 'u8[8192]{0}', space=vmem, size = 0x2000, scoped, tag = 'input window, operand 3, single buffered']
    #allocation6 [shape = 's32[1]{0}', space=sflag, size = 0x4, scoped, tag = 'scoped memory for tpu_custom_call.1']
    #allocation7 [shape = 'u8[4096]{0}', space=vmem, size = 0x1000, scoped, tag = 'output window, operand 0']
    #allocation8 [shape = 'u8[4096]{0}', space=vmem, size = 0x1000, scoped, tag = 'output window, operand 1']
    #allocation9 [shape = 's32[2]{0}', space=sflag, size = 0x8, scoped, tag = 'scoped memory for tpu_custom_call.1']
    #allocation10 [shape = 'u8[4096]{0}', space=vmem, size = 0x1000, scoped, tag = 'output window, operand 2']
    %13 = vsyncpa [#allocation3], 0
    %s14 = scalar_lea.sflag [#allocation3], 1
    %15 = vsyncpa %s14, 0
    %16 = vsyncpa [#allocation6], 0
    %17 = vsyncpa [#allocation4], 0
    %s18 = scalar_lea.sflag [#allocation4], 1
    %19 = vsyncpa %s18, 0
    %20 = vsyncpa [#allocation9], 0
    %s21 = scalar_lea.sflag [#allocation9], 1
    %22 = vsyncpa %s21, 0
    loop: start=0, step=1, limit=4
    $region2: #{tpu_custom_call.1} parent=1 // loop_pre_header
      _
    $region3: #{tpu_custom_call.1} parent=1 // loop_header
      %s24 = sphi 0, %s28
      %p25 = scmp.ge.s32.totalorder %s24, 4
      %s31 = sphi 0, %s43
      %s32 = sphi 0, %s39
      %s33 = sphi 0, %s31
      %s34 = sphi 0, %s32
      %s35 = sphi 0, %s33
      %s36 = sphi 0, %s34
      %s48 = sphi 0, %s50
      %s51 = sphi 0, %s48
      %s52 = sphi 0, %s51
      %s68 = sphi 0, %s52
      %s72 = sphi 0, %s72
      %s74 = sphi 0, %s72
      %s75 = sphi 0, %s74
      %s89 = sphi 0, %s75
      %s93 = sphi 0, %s93
      %s95 = sphi 0, %s93
      %s96 = sphi 0, %s95
      %s110 = sphi 0, %s96
      %s114 = sphi 0, %s114
      %s116 = sphi 0, %s114
      %s117 = sphi 0, %s116
      %s131 = sphi 0, %s117
      %s135 = sphi 0, %s135
      %s137 = sphi 0, %s135
      %s138 = sphi 0, %s137
      %s152 = sphi 0, %s138
      %s160 = sphi 0, %s162
      %s163 = sphi 0, %s160
      %s164 = sphi 0, %s163
      %s180 = sphi 0, %s164
      %s188 = sphi 0, %s190
      %s191 = sphi 0, %s188
      %s192 = sphi 0, %s191
      %s208 = sphi 0, %s192
      %s216 = sphi 0, %s218
      %s219 = sphi 0, %s216
      %s220 = sphi 0, %s219
      %s236 = sphi 0, %s220
    $region4: #{tpu_custom_call.1} parent=1 // loop_header_branch
      %27 = sbr.rel (%p25) target = $region8
    $region5: #{tpu_custom_call.1} parent=1 // loop_body
      %s29 = ssub.s32 %s24, 1
      %s30 = ssub.s32 %s24, 2
      %s37 = sadd.s32 1, %s32
      %p38 = scmp.ge.s32.totalorder %s37, 1
      %s39 = scalar_select %p38, 0, %s37
      %s40 = sadd.s32 1, %s31
      %s41 = scalar_select %p38, %s40, %s31
      %p42 = scmp.ge.s32.totalorder %s41, 2
      %s43 = scalar_select %p42, 0, %s41
      %s44 = ssub.s32 %s31, %s43
      %s45 = ssub.s32 %s32, %s39
      %s46 = sor.u32 %s44, %s45
      %p47 = scmp.eq.s32.totalorder %s46, 0
      %s49 = sadd.s32 %s48, 1
      %s50 = scalar_select %p47, %s48, %s49
      %p53 = pneg %p47
      %p54 = scmp.eq.s32.totalorder %s24, 1
      %p55 = por %p53, %p54
      %p56 = scmp.ne.s32.totalorder %s48, %s51
      %p57 = scmp.eq.s32.totalorder %s24, 0
      %p58 = por %p56, %p57
      %p59 = scmp.ne.s32.totalorder %s48, %s51
      %p60 = scmp.eq.s32.totalorder %s29, 1
      %p61 = por %p59, %p60
      %p62 = scmp.ne.s32.totalorder %s51, %s52
      %p63 = scmp.eq.s32.totalorder %s29, 0
      %p64 = por %p62, %p63
      %p65 = scmp.ne.s32.totalorder %s51, %s52
      %p66 = scmp.eq.s32.totalorder %s30, 1
      %p67 = por %p65, %p66
      %p69 = scmp.ne.s32.totalorder %s52, %s68
      %p70 = scmp.eq.s32.totalorder %s30, 0
      %p71 = por %p69, %p70
      %s73 = sadd.s32 %s72, 1
      %p76 = scmp.eq.s32.totalorder %s24, 1
      %p77 = scmp.ne.s32.totalorder %s72, %s74
      %p78 = scmp.eq.s32.totalorder %s24, 0
      %p79 = por %p77, %p78
      %p80 = scmp.ne.s32.totalorder %s72, %s74
      %p81 = scmp.eq.s32.totalorder %s29, 1
      %p82 = por %p80, %p81
      %p83 = scmp.ne.s32.totalorder %s74, %s75
      %p84 = scmp.eq.s32.totalorder %s29, 0
      %p85 = por %p83, %p84
      %p86 = scmp.ne.s32.totalorder %s74, %s75
      %p87 = scmp.eq.s32.totalorder %s30, 1
      %p88 = por %p86, %p87
      %p90 = scmp.ne.s32.totalorder %s75, %s89
      %p91 = scmp.eq.s32.totalorder %s30, 0
      %p92 = por %p90, %p91
      %s94 = sadd.s32 %s93, 1
      %p97 = scmp.eq.s32.totalorder %s24, 1
      %p98 = scmp.ne.s32.totalorder %s93, %s95
      %p99 = scmp.eq.s32.totalorder %s24, 0
      %p100 = por %p98, %p99
      %p101 = scmp.ne.s32.totalorder %s93, %s95
      %p102 = scmp.eq.s32.totalorder %s29, 1
      %p103 = por %p101, %p102
      %p104 = scmp.ne.s32.totalorder %s95, %s96
      %p105 = scmp.eq.s32.totalorder %s29, 0
      %p106 = por %p104, %p105
      %p107 = scmp.ne.s32.totalorder %s95, %s96
      %p108 = scmp.eq.s32.totalorder %s30, 1
      %p109 = por %p107, %p108
      %p111 = scmp.ne.s32.totalorder %s96, %s110
      %p112 = scmp.eq.s32.totalorder %s30, 0
      %p113 = por %p111, %p112
      %s115 = sadd.s32 %s114, 1
      %p118 = scmp.eq.s32.totalorder %s24, 1
      %p119 = scmp.ne.s32.totalorder %s114, %s116
      %p120 = scmp.eq.s32.totalorder %s24, 0
      %p121 = por %p119, %p120
      %p122 = scmp.ne.s32.totalorder %s114, %s116
      %p123 = scmp.eq.s32.totalorder %s29, 1
      %p124 = por %p122, %p123
      %p125 = scmp.ne.s32.totalorder %s116, %s117
      %p126 = scmp.eq.s32.totalorder %s29, 0
      %p127 = por %p125, %p126
      %p128 = scmp.ne.s32.totalorder %s116, %s117
      %p129 = scmp.eq.s32.totalorder %s30, 1
      %p130 = por %p128, %p129
      %p132 = scmp.ne.s32.totalorder %s117, %s131
      %p133 = scmp.eq.s32.totalorder %s30, 0
      %p134 = por %p132, %p133
      %s136 = sadd.s32 %s135, 1
      %p139 = scmp.eq.s32.totalorder %s24, 1
      %p140 = scmp.ne.s32.totalorder %s135, %s137
      %p141 = scmp.eq.s32.totalorder %s24, 0
      %p142 = por %p140, %p141
      %p143 = scmp.ne.s32.totalorder %s135, %s137
      %p144 = scmp.eq.s32.totalorder %s29, 1
      %p145 = por %p143, %p144
      %p146 = scmp.ne.s32.totalorder %s137, %s138
      %p147 = scmp.eq.s32.totalorder %s29, 0
      %p148 = por %p146, %p147
      %p149 = scmp.ne.s32.totalorder %s137, %s138
      %p150 = scmp.eq.s32.totalorder %s30, 1
      %p151 = por %p149, %p150
      %p153 = scmp.ne.s32.totalorder %s138, %s152
      %p154 = scmp.eq.s32.totalorder %s30, 0
      %p155 = por %p153, %p154
      %s156 = ssub.s32 %s31, %s43
      %s157 = ssub.s32 %s32, %s39
      %s158 = sor.u32 %s156, %s157
      %p159 = scmp.eq.s32.totalorder %s158, 0
      %s161 = sadd.s32 %s160, 1
      %s162 = scalar_select %p159, %s160, %s161
      %p165 = pneg %p159
      %p166 = scmp.eq.s32.totalorder %s24, 1
      %p167 = por %p165, %p166
      %p168 = scmp.ne.s32.totalorder %s160, %s163
      %p169 = scmp.eq.s32.totalorder %s24, 0
      %p170 = por %p168, %p169
      %p171 = scmp.ne.s32.totalorder %s160, %s163
      %p172 = scmp.eq.s32.totalorder %s29, 1
      %p173 = por %p171, %p172
      %p174 = scmp.ne.s32.totalorder %s163, %s164
      %p175 = scmp.eq.s32.totalorder %s29, 0
      %p176 = por %p174, %p175
      %p177 = scmp.ne.s32.totalorder %s163, %s164
      %p178 = scmp.eq.s32.totalorder %s30, 1
      %p179 = por %p177, %p178
      %p181 = scmp.ne.s32.totalorder %s164, %s180
      %p182 = scmp.eq.s32.totalorder %s30, 0
      %p183 = por %p181, %p182
      %s184 = ssub.s32 %s31, %s43
      %s185 = ssub.s32 %s32, %s39
      %s186 = sor.u32 %s184, %s185
      %p187 = scmp.eq.s32.totalorder %s186, 0
      %s189 = sadd.s32 %s188, 1
      %s190 = scalar_select %p187, %s188, %s189
      %p193 = pneg %p187
      %p194 = scmp.eq.s32.totalorder %s24, 1
      %p195 = por %p193, %p194
      %p196 = scmp.ne.s32.totalorder %s188, %s191
      %p197 = scmp.eq.s32.totalorder %s24, 0
      %p198 = por %p196, %p197
      %p199 = scmp.ne.s32.totalorder %s188, %s191
      %p200 = scmp.eq.s32.totalorder %s29, 1
      %p201 = por %p199, %p200
      %p202 = scmp.ne.s32.totalorder %s191, %s192
      %p203 = scmp.eq.s32.totalorder %s29, 0
      %p204 = por %p202, %p203
      %p205 = scmp.ne.s32.totalorder %s191, %s192
      %p206 = scmp.eq.s32.totalorder %s30, 1
      %p207 = por %p205, %p206
      %p209 = scmp.ne.s32.totalorder %s192, %s208
      %p210 = scmp.eq.s32.totalorder %s30, 0
      %p211 = por %p209, %p210
      %s212 = ssub.s32 %s31, %s43
      %s213 = ssub.s32 %s32, %s39
      %s214 = sor.u32 %s212, %s213
      %p215 = scmp.eq.s32.totalorder %s214, 0
      %s217 = sadd.s32 %s216, 1
      %s218 = scalar_select %p215, %s216, %s217
      %p221 = pneg %p215
      %p222 = scmp.eq.s32.totalorder %s24, 1
      %p223 = por %p221, %p222
      %p224 = scmp.ne.s32.totalorder %s216, %s219
      %p225 = scmp.eq.s32.totalorder %s24, 0
      %p226 = por %p224, %p225
      %p227 = scmp.ne.s32.totalorder %s216, %s219
      %p228 = scmp.eq.s32.totalorder %s29, 1
      %p229 = por %p227, %p228
      %p230 = scmp.ne.s32.totalorder %s219, %s220
      %p231 = scmp.eq.s32.totalorder %s29, 0
      %p232 = por %p230, %p231
      %p233 = scmp.ne.s32.totalorder %s219, %s220
      %p234 = scmp.eq.s32.totalorder %s30, 1
      %p235 = por %p233, %p234
      %p237 = scmp.ne.s32.totalorder %s220, %s236
      %p238 = scmp.eq.s32.totalorder %s30, 0
      %p239 = por %p237, %p238
      %p240 = scmp.le.s32.totalorder 1, %s24
      %p241 = scmp.lt.s32.totalorder %s24, 3
      %p242 = pnand %p240, %p241
      %p243 = pneg %p242
      // Predicated region
      $region9: #{tpu_custom_call.1} parent=5 // pred_check
        _
      $region10: #{tpu_custom_call.1} parent=5 // pred_check_branch
        %245 = sbr.rel (%p242) target = $region12
      $region11: #{tpu_custom_call.1} parent=5 // pred_region
        %s246 = ssub.s32 %s24, 1
        // Predicated region
        $region13: #{tpu_custom_call.1} parent=11 // pred_check
          %p247 = pneg %p85
        $region14: #{tpu_custom_call.1} parent=11 // pred_check_branch
          %249 = sbr.rel (%p247) target = $region16
        $region15: #{tpu_custom_call.1} parent=11 // pred_region
          _
        $region16: #{tpu_custom_call.1} parent=11 // pred_fallthru
          _
        // Predicated region
        $region17: #{tpu_custom_call.1} parent=11 // pred_check
          %p250 = pneg %p106
        $region18: #{tpu_custom_call.1} parent=11 // pred_check_branch
          %252 = sbr.rel (%p250) target = $region20
        $region19: #{tpu_custom_call.1} parent=11 // pred_region
          _
        $region20: #{tpu_custom_call.1} parent=11 // pred_fallthru
          _
        // Predicated region
        $region21: #{tpu_custom_call.1} parent=11 // pred_check
          %p253 = pneg %p127
        $region22: #{tpu_custom_call.1} parent=11 // pred_check_branch
          %255 = sbr.rel (%p253) target = $region24
        $region23: #{tpu_custom_call.1} parent=11 // pred_region
          %s257 = ssub.s32 256, 256
          %258 = vsyncadd [#allocation6], %s257
          %s259 = sshll.u32 [#allocation5], 4
          %s260 = int_to_ptr.vmem [resolvable:$true] %s259
          %265 = dma.hbm_to_vmem [thread:$0]  %s3, 256, %s260, [#allocation6], 64, 64, 4
        $region24: #{tpu_custom_call.1} parent=11 // pred_fallthru
          _
        // Predicated region
        $region25: #{tpu_custom_call.1} parent=11 // pred_check
          %p266 = pneg %p148
        $region26: #{tpu_custom_call.1} parent=11 // pred_check_branch
          %268 = sbr.rel (%p266) target = $region28
        $region27: #{tpu_custom_call.1} parent=11 // pred_region
          _
        $region28: #{tpu_custom_call.1} parent=11 // pred_fallthru
          _
      $region12: #{tpu_custom_call.1} parent=5 // pred_fallthru
        _
      %p269 = scmp.lt.s32.totalorder %s24, 2
      // Predicated region
      $region29: #{tpu_custom_call.1} parent=5 // pred_check
        %p270 = pneg %p269
      $region30: #{tpu_custom_call.1} parent=5 // pred_check_branch
        %272 = sbr.rel (%p270) target = $region32
      $region31: #{tpu_custom_call.1} parent=5 // pred_region
        // Predicated region
        $region33: #{tpu_custom_call.1} parent=31 // pred_check
          %p273 = pneg %p58
        $region34: #{tpu_custom_call.1} parent=31 // pred_check_branch
          %275 = sbr.rel (%p273) target = $region36
        $region35: #{tpu_custom_call.1} parent=31 // pred_region
          %s276 = sand.u32 %s48, 1
          %s277 = scalar_lea.sflag [#allocation3], %s276
          %s278 = sand.u32 %s48, 1
          %s279 = smul.addr %s278, 8
          %s280 = scalar_lea.vmem [#allocation2], %s279
          %s282 = ssub.s32 128, 128
          %283 = vsyncadd %s277, %s282
          %s284 = sadd.s32 %s32, %s31
          %s285 = smul.addr %s284, 128
          %s286 = scalar_lea.hbm %s0, %s285
          %s288 = sshll.u32 %s280, 4
          %s289 = int_to_ptr.vmem [resolvable:$true] %s288
          %291 = dma.hbm_to_vmem [thread:$0]  %s286, 128, %s289, %s277
        $region36: #{tpu_custom_call.1} parent=31 // pred_fallthru
          _
      $region32: #{tpu_custom_call.1} parent=5 // pred_fallthru
        _
      %p292 = scmp.le.s32.totalorder 1, %s24
      %p293 = scmp.lt.s32.totalorder %s24, 3
      %p294 = pnand %p292, %p293
      %p295 = pneg %p294
      // Predicated region
      $region37: #{tpu_custom_call.1} parent=5 // pred_check
        _
      $region38: #{tpu_custom_call.1} parent=5 // pred_check_branch
        %297 = sbr.rel (%p294) target = $region40
      $region39: #{tpu_custom_call.1} parent=5 // pred_region
        %s298 = ssub.s32 %s24, 1
        %s299 = sand.u32 %s51, 1
        %s300 = scalar_lea.sflag [#allocation3], %s299
        %s301 = sand.u32 %s51, 1
        %s302 = smul.addr %s301, 8
        %s303 = scalar_lea.vmem [#allocation2], %s302
        // Predicated region
        $region41: #{tpu_custom_call.1} parent=39 // pred_check
          %p304 = pneg %p64
        $region42: #{tpu_custom_call.1} parent=39 // pred_check_branch
          %306 = sbr.rel (%p304) target = $region44
        $region43: #{tpu_custom_call.1} parent=39 // pred_region
          %307 = dma.done %s300, 128
        $region44: #{tpu_custom_call.1} parent=39 // pred_fallthru
          _
        // Predicated region
        $region45: #{tpu_custom_call.1} parent=39 // pred_check
          %p308 = pneg %p127
        $region46: #{tpu_custom_call.1} parent=39 // pred_check_branch
          %310 = sbr.rel (%p308) target = $region48
        $region47: #{tpu_custom_call.1} parent=39 // pred_region
          %311 = dma.done [#allocation6], 256
        $region48: #{tpu_custom_call.1} parent=39 // pred_fallthru
          _
        %s312 = sand.u32 %s51, 1
        %s313 = scalar_lea.sflag [#allocation3], %s312
        %s314 = sand.u32 %s51, 1
        %s315 = smul.addr %s314, 8
        %s316 = scalar_lea.vmem [#allocation2], %s315
        %p317 = pneg %p64
        %p318 = pneg %p61
        %p319 = pneg %p85
        %p320 = pneg %p82
        %p321 = pneg %p106
        %p322 = pneg %p103
        %p323 = pneg %p127
        %p324 = pneg %p124
        %p325 = pneg %p148
        %p326 = pneg %p145
        %p327 = pneg %p176
        %p328 = pneg %p173
        %s329 = sand.u32 %s163, 1
        %s330 = scalar_lea.sflag [#allocation4], %s329
        %s331 = sand.u32 %s163, 1
        %s332 = smul.addr %s331, 4
        %s333 = scalar_lea.vmem [#allocation7], %s332
        %p334 = pneg %p204
        %p335 = pneg %p201
        %s336 = sand.u32 %s29, 1
        %s337 = scalar_lea.sflag [#allocation9], %s336
        %s338 = sand.u32 %s191, 1
        %s339 = smul.addr %s338, 4
        %s340 = scalar_lea.vmem [#allocation8], %s339
        %p341 = pneg %p232
        %p342 = pneg %p229
        %s343 = sand.u32 %s29, 1
        %s344 = scalar_lea.sflag [#allocation9], %s343
        %s345 = sand.u32 %s219, 1
        %s346 = smul.addr %s345, 4
        %s347 = scalar_lea.vmem [#allocation10], %s346
        %v349 = vld [vmem:[%s303] sm:$0xff]
        %v350 = vld [vmem:[%s1] sm:$0x1]
        %v351 = vld [vmem:[%s2] sm:$0x1]
        %vm352 = vcmask 261120
        %v353 = vsel %vm352, %v349, 0.0
        %354 = vadd.xlane.f32.xlu0 %v353
        %v355 = vpop.xlane.xlu0 %354
        %v356 = vmul.f32 %v355, 0.03125
        %v357 = vmul.f32 %v349, %v349
        %v358 = vsel %vm352, %v357, 0.0
        %359 = vadd.xlane.f32.xlu0 %v358
        %v360 = vpop.xlane.xlu0 %359
        %v361 = vmul.f32 %v360, 0.03125
        %v362 = vmul.f32 %v356, %v356
        %v363 = vsub.f32 %v361, %v362
        %v364 = vsub.f32 %v349, %v356
        %v365 = vadd.f32 %v363, 1e-05
        %v366 = vrsqrt.pop %v365
        %v367 = vmul.f32 %v364, %v366
        %v369 = vlaneseq
        %v370 = vshrl.u32 %v369, 7
        %v371 = vsub.s32 0, %v370
        %v372 = vrot.slane %v350, %v371
        %v374 = vmul.f32 %v367, %v372
        %v376 = vlaneseq
        %v377 = vshrl.u32 %v376, 7
        %v378 = vsub.s32 0, %v377
        %v379 = vrot.slane %v351, %v378
        %v381 = vadd.f32 %v374, %v379
        %v382 = vpack.c.bf16 %v381, %v381
        %v383 = vld [vmem:[#allocation5] sm:$0xf]
        %v384 = vld [vmem:[#allocation5 + $0x4] sm:$0xf]
        %v385 = vld [vmem:[#allocation5 + $0x8] sm:$0xf]
        %v386 = vld [vmem:[#allocation5 + $0xc] sm:$0xf]
        %v387 = vld [vmem:[%s4] sm:$0x1]
        %v389 = vlaneseq
        %v390 = vshrl.u32 %v389, 7
        %v391 = vsub.s32 0, %v390
        %v392 = vrot.slane %v387, %v391
        %v398 = vunpack.c.l.b16 %v383
        %v399 = vunpack.c.l.b16 %v384
        %v400 = vunpack.c.l.b16 %v385
        %v401 = vunpack.c.l.b16 %v386
        %v402 = vpack.c.b16 %v399, %v398
        %v403 = vpack.c.b16 %v401, %v400
        %v407 = vsel %vm352, %v382, 0
        %409 = vmatprep.subr.bf16.mxu0 0
        %410 = vmatpush1.bf16.msra.mxu0 %v402
        %411 = vmatprep.subr.bf16.mxu0 0
        %412 = vmatpush1.bf16.msra.mxu0 %v403
        %413 = vmatprep.subr.bf16.mxu0 0
        %414 = vmatpush1.bf16.msra.mxu0 0
        %415 = vmatprep.subr.bf16.mxu0 0
        %416 = vmatpush1.bf16.msra.mxu0 0
        %417 = vmatprep.subr.bf16.mxu0 0
        %418 = vmatpush1.bf16.msra.mxu0 0
        %419 = vmatprep.subr.bf16.mxu0 0
        %420 = vmatpush1.bf16.msra.mxu0 0
        %421 = vmatprep.subr.bf16.mxu0 0
        %422 = vmatpush1.bf16.msra.mxu0 0
        %423 = vmatprep.subr.bf16.mxu0 0
        %424 = vmatpush1.bf16.msra.mxu0 0
        %425 = vmatprep.subr.bf16.mxu0 0
        %426 = vmatpush1.bf16.msra.mxu0 0
        %427 = vmatprep.subr.bf16.mxu0 0
        %428 = vmatpush1.bf16.msra.mxu0 0
        %429 = vmatprep.subr.bf16.mxu0 0
        %430 = vmatpush1.bf16.msra.mxu0 0
        %431 = vmatprep.subr.bf16.mxu0 0
        %432 = vmatpush1.bf16.msra.mxu0 0
        %433 = vmatprep.subr.bf16.mxu0 0
        %434 = vmatpush1.bf16.msra.mxu0 0
        %435 = vmatprep.subr.bf16.mxu0 0
        %436 = vmatpush1.bf16.msra.mxu0 0
        %437 = vmatprep.subr.bf16.mxu0 0
        %438 = vmatpush1.bf16.msra.mxu0 0
        %439 = vmatprep.subr.bf16.mxu0 0
        %440 = vmatpush1.bf16.msra.mxu0 0
        %441 = vmatprep.mubr.bf16.mxu0 0
        %442 = vmatmul.mubr.bf16.gmra.mrb[0].mxu0 %v407
        %v443 = vpop.f32.mrb[0].mxu0
        %v444 = vadd.f32 %v392, %v443
        %v445 = vpop.f32.mrb[0].mxu0
        %v446 = vpop.f32.mrb[0].mxu0
        %v447 = vpop.f32.mrb[0].mxu0
        %448 = vdwg.mxu0
        %v449 = vpack.c.bf16 %v444, %v444
        %vm450 = vcmask 257024
        %451 = vst.msk [vmem:[%s333] sm:$0xf] %vm450, %v449
        %v453 = vunpack.c.l.b16 %v449
        %v454 = vpack.c.b16 %v453, %v453
        %455 = vrot.lane.b32.xlu0 %v454, 96
        %v456 = vpop.permute.xlu0 %455
        %458 = vst.msk [vmem:[%s340] sm:$0xf] %vm450, %v456
        %459 = vrot.lane.b32.xlu0 %v454, 64
        %v460 = vpop.permute.xlu0 %459
        %462 = vst.msk [vmem:[%s347] sm:$0xf] %vm450, %v460
        %s463 = sand.u32 %s163, 1
        %s464 = scalar_lea.sflag [#allocation4], %s463
        %s465 = sand.u32 %s163, 1
        %s466 = smul.addr %s465, 4
        %s467 = scalar_lea.vmem [#allocation7], %s466
        %s468 = sand.u32 %s29, 1
        %s469 = scalar_lea.sflag [#allocation9], %s468
        %s470 = sand.u32 %s191, 1
        %s471 = smul.addr %s470, 4
        %s472 = scalar_lea.vmem [#allocation8], %s471
        %s473 = sand.u32 %s29, 1
        %s474 = scalar_lea.sflag [#allocation9], %s473
        %s475 = sand.u32 %s219, 1
        %s476 = smul.addr %s475, 4
        %s477 = scalar_lea.vmem [#allocation10], %s476
        // Predicated region
        $region49: #{tpu_custom_call.1} parent=39 // pred_check
          %p478 = pneg %p173
        $region50: #{tpu_custom_call.1} parent=39 // pred_check_branch
          %480 = sbr.rel (%p478) target = $region52
        $region51: #{tpu_custom_call.1} parent=39 // pred_region
          %s482 = ssub.s32 64, 64
          %483 = vsyncadd %s464, %s482
          %s484 = sadd.s32 %s34, %s33
          %s485 = smul.addr %s484, 64
          %s486 = scalar_lea.hbm %s5, %s485
          %s488 = sshll.u32 %s467, 4
          %s489 = int_to_ptr.vmem [resolvable:$true] %s488
          %491 = dma.vmem_to_hbm [thread:$0]  %s489, 64, %s486, %s464
        $region52: #{tpu_custom_call.1} parent=39 // pred_fallthru
          _
        // Predicated region
        $region53: #{tpu_custom_call.1} parent=39 // pred_check
          %p492 = pneg %p201
        $region54: #{tpu_custom_call.1} parent=39 // pred_check_branch
          %494 = sbr.rel (%p492) target = $region56
        $region55: #{tpu_custom_call.1} parent=39 // pred_region
          %s496 = ssub.s32 64, 64
          %497 = vsyncadd %s469, %s496
          %s498 = sadd.s32 %s34, %s33
          %s499 = smul.addr %s498, 64
          %s500 = scalar_lea.hbm %s6, %s499
          %s502 = sshll.u32 %s472, 4
          %s503 = int_to_ptr.vmem [resolvable:$true] %s502
          %505 = dma.vmem_to_hbm [thread:$0]  %s503, 64, %s500, %s469
        $region56: #{tpu_custom_call.1} parent=39 // pred_fallthru
          _
        // Predicated region
        $region57: #{tpu_custom_call.1} parent=39 // pred_check
          %p506 = pneg %p229
        $region58: #{tpu_custom_call.1} parent=39 // pred_check_branch
          %508 = sbr.rel (%p506) target = $region60
        $region59: #{tpu_custom_call.1} parent=39 // pred_region
          %s510 = ssub.s32 64, 64
          %511 = vsyncadd %s474, %s510
          %s512 = sadd.s32 %s34, %s33
          %s513 = smul.addr %s512, 64
          %s514 = scalar_lea.hbm %s7, %s513
          %s516 = sshll.u32 %s477, 4
          %s517 = int_to_ptr.vmem [resolvable:$true] %s516
          %519 = dma.vmem_to_hbm [thread:$0]  %s517, 64, %s514, %s474
        $region60: #{tpu_custom_call.1} parent=39 // pred_fallthru
          _
      $region40: #{tpu_custom_call.1} parent=5 // pred_fallthru
        _
      %p520 = scmp.le.s32.totalorder 2, %s24
      // Predicated region
      $region61: #{tpu_custom_call.1} parent=5 // pred_check
        %p521 = pneg %p520
      $region62: #{tpu_custom_call.1} parent=5 // pred_check_branch
        %523 = sbr.rel (%p521) target = $region64
      $region63: #{tpu_custom_call.1} parent=5 // pred_region
        %s524 = ssub.s32 %s24, 2
        // Predicated region
        $region65: #{tpu_custom_call.1} parent=63 // pred_check
          %p525 = pneg %p179
        $region66: #{tpu_custom_call.1} parent=63 // pred_check_branch
          %527 = sbr.rel (%p525) target = $region68
        $region67: #{tpu_custom_call.1} parent=63 // pred_region
          %s528 = sand.u32 %s164, 1
          %s529 = scalar_lea.sflag [#allocation4], %s528
          %s530 = sand.u32 %s164, 1
          %s531 = smul.addr %s530, 4
          %s532 = scalar_lea.vmem [#allocation7], %s531
          %533 = dma.done %s529, 64
        $region68: #{tpu_custom_call.1} parent=63 // pred_fallthru
          _
        // Predicated region
        $region69: #{tpu_custom_call.1} parent=63 // pred_check
          %p534 = pneg %p207
        $region70: #{tpu_custom_call.1} parent=63 // pred_check_branch
          %536 = sbr.rel (%p534) target = $region72
        $region71: #{tpu_custom_call.1} parent=63 // pred_region
          %s537 = sand.u32 %s30, 1
          %s538 = scalar_lea.sflag [#allocation9], %s537
          %s539 = sand.u32 %s192, 1
          %s540 = smul.addr %s539, 4
          %s541 = scalar_lea.vmem [#allocation8], %s540
          %542 = dma.done %s538, 64
        $region72: #{tpu_custom_call.1} parent=63 // pred_fallthru
          _
        // Predicated region
        $region73: #{tpu_custom_call.1} parent=63 // pred_check
          %p543 = pneg %p235
        $region74: #{tpu_custom_call.1} parent=63 // pred_check_branch
          %545 = sbr.rel (%p543) target = $region76
        $region75: #{tpu_custom_call.1} parent=63 // pred_region
          %s546 = sand.u32 %s30, 1
          %s547 = scalar_lea.sflag [#allocation9], %s546
          %s548 = sand.u32 %s220, 1
          %s549 = smul.addr %s548, 4
          %s550 = scalar_lea.vmem [#allocation10], %s549
          %551 = dma.done %s547, 64
        $region76: #{tpu_custom_call.1} parent=63 // pred_fallthru
          _
      $region64: #{tpu_custom_call.1} parent=5 // pred_fallthru
        _
    $region6: #{tpu_custom_call.1} parent=1 // loop_footer
      %s28 = sadd.s32 1, %s24
    $region7: #{tpu_custom_call.1} parent=1 // loop_footer_branch
      %23 = sbr.rel target = $region3
    $region8: #{tpu_custom_call.1} parent=1 // loop_exit
      _
    %552 = vsyncpa [#allocation3], 1
    %s553 = scalar_lea.sflag [#allocation3], 1
    %554 = vsyncpa %s553, 1
    %555 = vsyncpa [#allocation6], 1
    %556 = vsyncpa [#allocation4], 1
    %s557 = scalar_lea.sflag [#allocation4], 1
    %558 = vsyncpa %s557, 1
    %559 = vsyncpa [#allocation9], 1
    %s560 = scalar_lea.sflag [#allocation9], 1
    %561 = vsyncpa %s560, 1

</llo_original>
